<compile_context>
chip_gen: v5e
topology: v5e:2x2
jax: 0.10.0
libtpu: 0.0.40
codegen_flags: <defaults>
</compile_context>

<pallas_src>
import functools

import jax
import jax.numpy as jnp
from jax import lax
from jax.experimental import pallas as pl
from jax.experimental.pallas import tpu as pltpu

BN_EPS = 1e-5
LANE = 128


def _round_up(x, m):
    return (x + m - 1) // m * m


def _stats_kernel(pat_ref, w_ref, sum_ref, sq_ref):
    """Pass 0: per-(phase, channel) column sums / sums-of-squares of the conv output.

    sum_ref / sq_ref are resident accumulator output blocks (index_map constant across the M grid);
    this pass's M axis must stay "arbitrary".
    """
    acc = jnp.dot(pat_ref[...], w_ref[...], preferred_element_type=jnp.float32)

    @pl.when(pl.program_id(0) == 0)
    def _init():
        sum_ref[...] = jnp.zeros_like(sum_ref)
        sq_ref[...] = jnp.zeros_like(sq_ref)

    sum_ref[...] = sum_ref[...] + jnp.sum(acc, axis=0, keepdims=True)
    sq_ref[...] = sq_ref[...] + jnp.sum(acc * acc, axis=0, keepdims=True)


def _apply_kernel(pat_ref, w_ref, scale_ref, shift_ref, o_ref):
    """Pass 1: recompute the (cheap, K = Cin*9) matmul, apply BN affine + ReLU, store bf16 tiles."""
    acc = jnp.dot(pat_ref[...], w_ref[...], preferred_element_type=jnp.float32)
    y = acc * scale_ref[...] + shift_ref[...]
    o_ref[...] = jnp.maximum(y, 0.0).astype(o_ref.dtype)


@functools.partial(jax.jit, static_argnames=("block_m",))
def up_conv_forward(x, w, b, gamma, beta, *, block_m=512):
    """x: (N, Cin, H, W) f32 -> (N, Cout, 2H, 2W) f32.

    `b` (the Conv2d bias) is accepted for parameter parity but is a mathematical no-op:
    training-mode BatchNorm subtracts the per-channel batch mean, which removes any
    per-channel constant added by the conv bias.
    """
    del b
    if block_m % 16 != 0:
        raise ValueError("block_m must be a multiple of 16")

    n, cin, h, wdt = x.shape
    cout = w.shape[0]
    k = cin * 9
    n_real = 4 * cout                      # real output lanes: 4 sub-pixel phases x Cout, packed tight
    nl = _round_up(n_real, LANE)           # lane-dense padded width

    # --- subpixel weight re-mapping --------------------------------------------------------------
    # T[d, t, kk]: which original 3x3 conv tap kk (along one spatial axis) lands on tap t of the
    # 3x3 window of the zero-padded ORIGINAL input, for sub-pixel phase offset d in {0, 1}.
    t_map = jnp.array(
        [[[1., 0., 0.], [0., 1., 1.], [0., 0., 0.]],   # d = 0
         [[0., 0., 0.], [1., 1., 0.], [0., 0., 1.]]],  # d = 1
        dtype=jnp.float32)
    # W_eff[c, th, tw, di, dj, o]
    w_eff = jnp.einsum("ati,buj,ocij->ctuabo", t_map, t_map, w.astype(jnp.float32))
    w2 = jnp.zeros((k, nl), jnp.float32).at[:, :n_real].set(w_eff.reshape(k, n_real))
    w2 = w2.astype(jnp.bfloat16)

    # --- im2col of the zero-padded ORIGINAL input (no 4x upsample blow-up) -------------------------
    xp = jnp.pad(x, ((0, 0), (0, 0), (1, 1), (1, 1)))
    cols = [xp[:, :, t:t + h, u:u + wdt] for t in range(3) for u in range(3)]
    pat = jnp.stack(cols, axis=2)                                  # (N, Cin, 9, H, W)
    pat = pat.transpose(0, 3, 4, 1, 2).reshape(n * h * wdt, k)     # (M, K), K ordered c*9 + t*3 + u
    m = n * h * wdt

    tm = block_m
    m_pad = _round_up(max(m, tm), tm)
    pat = jnp.pad(pat, ((0, m_pad - m), (0, 0))).astype(jnp.bfloat16)  # zero rows: no effect on BN sums

    grid = (m_pad // tm,)
    pat_spec = pl.BlockSpec((tm, k), lambda i: (i, 0))     # streamed over M
    w_spec = pl.BlockSpec((k, nl), lambda i: (0, 0))       # resident combined weights
    vec_spec = pl.BlockSpec((1, nl), lambda i: (0, 0))     # resident per-lane vectors

    # ---- pass 0: streaming BN statistics (sequential accumulation over M) -------------------------
    sums, sqs = pl.pallas_call(
        _stats_kernel,
        out_shape=(jax.ShapeDtypeStruct((1, nl), jnp.float32),
                   jax.ShapeDtypeStruct((1, nl), jnp.float32)),
        grid_spec=pltpu.PrefetchScalarGridSpec(
            num_scalar_prefetch=0,
            grid=grid,
            in_specs=[pat_spec, w_spec],
            out_specs=(vec_spec, vec_spec),
        ),
        compiler_params=pltpu.CompilerParams(
            dimension_semantics=("arbitrary",)),   # accumulator: must NOT be parallel
    )(pat, w2)

    # ---- finalize BN scale / shift (tiny f32 math on Cout elements) -------------------------------
    count = 4.0 * m                                        # per-channel count = N * 2H * 2W
    s_tot = jnp.sum(sums[0, :n_real].reshape(4, cout), axis=0)
    q_tot = jnp.sum(sqs[0, :n_real].reshape(4, cout), axis=0)
    mean = s_tot / count
    var = jnp.maximum(q_tot / count - mean * mean, 0.0)    # biased var (PyTorch training BN), clamped
    scale_c = gamma.astype(jnp.float32) * lax.rsqrt(var + BN_EPS)
    shift_c = beta.astype(jnp.float32) - mean * scale_c
    scale2 = jnp.zeros((1, nl), jnp.float32).at[0, :n_real].set(jnp.tile(scale_c, 4))
    shift2 = jnp.zeros((1, nl), jnp.float32).at[0, :n_real].set(jnp.tile(shift_c, 4))

    # ---- pass 1: normalize + ReLU, lane-dense bf16 tiles; M axis megacore-shardable ---------------
    out_flat = pl.pallas_call(
        _apply_kernel,
        out_shape=jax.ShapeDtypeStruct((m_pad, nl), jnp.bfloat16),
        grid_spec=pltpu.PrefetchScalarGridSpec(
            num_scalar_prefetch=0,
            grid=grid,
            in_specs=[pat_spec, w_spec, vec_spec, vec_spec],
            out_specs=pl.BlockSpec((tm, nl), lambda i: (i, 0)),
        ),
        compiler_params=pltpu.CompilerParams(
            dimension_semantics=("parallel",)),
    )(pat, w2, scale2, shift2)

    # ---- pixel-shuffle the 4 phases back to NCHW (contiguous lane slice, one transpose) -----------
    y = out_flat[:m, :n_real].astype(jnp.float32).reshape(n, h, wdt, 2, 2, cout)
    y = y.transpose(0, 5, 1, 3, 2, 4).reshape(n, cout, 2 * h, 2 * wdt)
    return y


def _reference(x, w, b, gamma, beta):
    """Pure-JAX f32 reference matching PyTorch up_conv forward (training-mode BN)."""
    xu = jnp.repeat(jnp.repeat(x, 2, axis=2), 2, axis=3)
    y = lax.conv_general_dilated(
        xu, w, window_strides=(1, 1), padding=((1, 1), (1, 1)),
        dimension_numbers=("NCHW", "OIHW", "NCHW"))
    y = y + b[None, :, None, None]
    mean = jnp.mean(y, axis=(0, 2, 3), keepdims=True)
    var = jnp.mean((y - mean) ** 2, axis=(0, 2, 3), keepdims=True)
    y = (y - mean) / jnp.sqrt(var + BN_EPS)
    y = y * gamma[None, :, None, None] + beta[None, :, None, None]
    return jnp.maximum(y, 0.0)


if __name__ == "__main__":
    key = jax.random.PRNGKey(0)
    k_x, k_w, k_b, k_g, k_be = jax.random.split(key, 5)

    N, CIN, COUT, H, W = 2, 4, 8, 16, 16

    x = jax.random.normal(k_x, (N, CIN, H, W), dtype=jnp.float32)
    # Deterministic synthetic parameters (shapes follow nn.Conv2d / nn.BatchNorm2d).
    w = jax.random.normal(k_w, (COUT, CIN, 3, 3), dtype=jnp.float32) * 0.1
    b = jax.random.normal(k_b, (COUT,), dtype=jnp.float32) * 0.1
    gamma = 1.0 + 0.1 * jax.random.normal(k_g, (COUT,), dtype=jnp.float32)
    beta = 0.1 * jax.random.normal(k_be, (COUT,), dtype=jnp.float32)

    out = jax.block_until_ready(up_conv_forward(x, w, b, gamma, beta))
    ref = _reference(x, w, b, gamma, beta)

    assert out.shape == (N, COUT, 2 * H, 2 * W)
    err = float(jnp.max(jnp.abs(out - ref)))
    # bf16 MXU inputs (f32 accumulation) + bf16 output store vs a pure-f32 reference:
    # expect O(1e-2) worst case.
    assert err < 6e-2, f"mismatch vs reference: max abs err = {err}"
    print("KERNEL_OK")
</pallas_src>

<mosaic_0001>
module attributes {stable_mosaic.version = 11 : i64} {
  func.func @_stats_kernel(%arg0: i32, %arg1: memref<512x36xbf16, #tpu.memory_space<vmem>>, %arg2: memref<36x128xbf16, #tpu.memory_space<vmem>>, %arg3: memref<1x128xf32, #tpu.memory_space<vmem>>, %arg4: memref<1x128xf32, #tpu.memory_space<vmem>>) attributes {dimension_semantics = [#tpu.dimension_semantics<arbitrary>], iteration_bounds = array<i64: 1>, scalar_prefetch = 0 : i64, scratch_operands = 0 : i64, tpu.core_type = #tpu.core_type<tc>, window_params = [{transform_indices = @transform_0, window_bounds = array<i64: 512, 36>}, {pipeline_mode = #tpu.pipeline_mode<synchronous>, transform_indices = @transform_1, window_bounds = array<i64: 36, 128>}, {pipeline_mode = #tpu.pipeline_mode<synchronous>, transform_indices = @transform_2, window_bounds = array<i64: 1, 128>}, {pipeline_mode = #tpu.pipeline_mode<synchronous>, transform_indices = @transform_3, window_bounds = array<i64: 1, 128>}]} {
    %c0 = arith.constant 0 : index
    %c0_0 = arith.constant 0 : index
    %0 = vector.load %arg1[%c0, %c0_0] : memref<512x36xbf16, #tpu.memory_space<vmem>>, vector<512x36xbf16>
    %c0_1 = arith.constant 0 : index
    %c0_2 = arith.constant 0 : index
    %1 = vector.load %arg2[%c0_1, %c0_2] : memref<36x128xbf16, #tpu.memory_space<vmem>>, vector<36x128xbf16>
    %cst = arith.constant dense<0.000000e+00> : vector<512x128xf32>
    %2 = tpu.matmul %0, %1, %cst {dimension_numbers = #tpu.dot_dimension_numbers<[1], [0], [0], [1], [0, 0, 1, 1], [], []>} : vector<512x36xbf16>, vector<36x128xbf16>, vector<512x128xf32> -> vector<512x128xf32>
    %c0_i32 = arith.constant 0 : i32
    %3 = arith.cmpi eq, %arg0, %c0_i32 : i32
    %4 = arith.extui %3 : i1 to i32
    %c0_i32_3 = arith.constant 0 : i32
    %5 = arith.cmpi ne, %4, %c0_i32_3 : i32
    scf.if %5 {
      %cst_14 = arith.constant 0.000000e+00 : f32
      %17 = vector.broadcast %cst_14 : f32 to vector<1x128xf32>
      %c0_15 = arith.constant 0 : index
      %c0_16 = arith.constant 0 : index
      %18 = vector.load %arg3[%c0_15, %c0_16] : memref<1x128xf32, #tpu.memory_space<vmem>>, vector<1x128xf32>
      tpu.vector_store %arg3[%c0_15, %c0_16], %17 {strides = array<i32>} : memref<1x128xf32, #tpu.memory_space<vmem>>, vector<1x128xf32>,
      %cst_17 = arith.constant 0.000000e+00 : f32
      %19 = vector.broadcast %cst_17 : f32 to vector<1x128xf32>
      %c0_18 = arith.constant 0 : index
      %c0_19 = arith.constant 0 : index
      %20 = vector.load %arg4[%c0_18, %c0_19] : memref<1x128xf32, #tpu.memory_space<vmem>>, vector<1x128xf32>
      tpu.vector_store %arg4[%c0_18, %c0_19], %19 {strides = array<i32>} : memref<1x128xf32, #tpu.memory_space<vmem>>, vector<1x128xf32>,
    } else {
    }
    %c0_4 = arith.constant 0 : index
    %c0_5 = arith.constant 0 : index
    %6 = vector.load %arg3[%c0_4, %c0_5] : memref<1x128xf32, #tpu.memory_space<vmem>>, vector<1x128xf32>
    %cst_6 = arith.constant dense<0.000000e+00> : vector<128xf32>
    %7 = vector.multi_reduction <add>, %2, %cst_6 [0] : vector<512x128xf32> to vector<128xf32>
    %8 = vector.shape_cast %7 : vector<128xf32> to vector<1x128xf32>
    %9 = arith.addf %6, %8 : vector<1x128xf32>
    %c0_7 = arith.constant 0 : index
    %c0_8 = arith.constant 0 : index
    %10 = vector.load %arg3[%c0_7, %c0_8] : memref<1x128xf32, #tpu.memory_space<vmem>>, vector<1x128xf32>
    tpu.vector_store %arg3[%c0_7, %c0_8], %9 {strides = array<i32>} : memref<1x128xf32, #tpu.memory_space<vmem>>, vector<1x128xf32>,
    %c0_9 = arith.constant 0 : index
    %c0_10 = arith.constant 0 : index
    %11 = vector.load %arg4[%c0_9, %c0_10] : memref<1x128xf32, #tpu.memory_space<vmem>>, vector<1x128xf32>
    %12 = arith.mulf %2, %2 : vector<512x128xf32>
    %cst_11 = arith.constant dense<0.000000e+00> : vector<128xf32>
    %13 = vector.multi_reduction <add>, %12, %cst_11 [0] : vector<512x128xf32> to vector<128xf32>
    %14 = vector.shape_cast %13 : vector<128xf32> to vector<1x128xf32>
    %15 = arith.addf %11, %14 : vector<1x128xf32>
    %c0_12 = arith.constant 0 : index
    %c0_13 = arith.constant 0 : index
    %16 = vector.load %arg4[%c0_12, %c0_13] : memref<1x128xf32, #tpu.memory_space<vmem>>, vector<1x128xf32>
    tpu.vector_store %arg4[%c0_12, %c0_13], %15 {strides = array<i32>} : memref<1x128xf32, #tpu.memory_space<vmem>>, vector<1x128xf32>,
    return
  }
  func.func @transform_0(%arg0: i32) -> (i32, i32) {
    %c0_i32 = arith.constant 0 : i32
    %c0_i32_0 = arith.constant 0 : i32
    return %arg0, %c0_i32 : i32, i32
  }
  func.func @transform_1(%arg0: i32) -> (i32, i32) {
    %c0_i32 = arith.constant 0 : i32
    %c0_i32_0 = arith.constant 0 : i32
    %c0_i32_1 = arith.constant 0 : i32
    return %c0_i32, %c0_i32_0 : i32, i32
  }
  func.func @transform_2(%arg0: i32) -> (i32, i32) {
    %c0_i32 = arith.constant 0 : i32
    %c0_i32_0 = arith.constant 0 : i32
    %c0_i32_1 = arith.constant 0 : i32
    return %c0_i32, %c0_i32_0 : i32, i32
  }
  func.func @transform_3(%arg0: i32) -> (i32, i32) {
    %c0_i32 = arith.constant 0 : i32
    %c0_i32_0 = arith.constant 0 : i32
    %c0_i32_1 = arith.constant 0 : i32
    return %c0_i32, %c0_i32_0 : i32, i32
  }
}

module attributes {stable_mosaic.version = 11 : i64} {
  func.func @_apply_kernel(%arg0: i32, %arg1: memref<512x36xbf16, #tpu.memory_space<vmem>>, %arg2: memref<36x128xbf16, #tpu.memory_space<vmem>>, %arg3: memref<1x128xf32, #tpu.memory_space<vmem>>, %arg4: memref<1x128xf32, #tpu.memory_space<vmem>>, %arg5: memref<512x128xbf16, #tpu.memory_space<vmem>>) attributes {dimension_semantics = [#tpu.dimension_semantics<parallel>], iteration_bounds = array<i64: 1>, scalar_prefetch = 0 : i64, scratch_operands = 0 : i64, tpu.core_type = #tpu.core_type<tc>, window_params = [{transform_indices = @transform_0, window_bounds = array<i64: 512, 36>}, {pipeline_mode = #tpu.pipeline_mode<synchronous>, transform_indices = @transform_1, window_bounds = array<i64: 36, 128>}, {pipeline_mode = #tpu.pipeline_mode<synchronous>, transform_indices = @transform_2, window_bounds = array<i64: 1, 128>}, {pipeline_mode = #tpu.pipeline_mode<synchronous>, transform_indices = @transform_3, window_bounds = array<i64: 1, 128>}, {transform_indices = @transform_4, window_bounds = array<i64: 512, 128>}]} {
    %c0 = arith.constant 0 : index
    %c0_0 = arith.constant 0 : index
    %0 = vector.load %arg1[%c0, %c0_0] : memref<512x36xbf16, #tpu.memory_space<vmem>>, vector<512x36xbf16>
    %c0_1 = arith.constant 0 : index
    %c0_2 = arith.constant 0 : index
    %1 = vector.load %arg2[%c0_1, %c0_2] : memref<36x128xbf16, #tpu.memory_space<vmem>>, vector<36x128xbf16>
    %cst = arith.constant dense<0.000000e+00> : vector<512x128xf32>
    %2 = tpu.matmul %0, %1, %cst {dimension_numbers = #tpu.dot_dimension_numbers<[1], [0], [0], [1], [0, 0, 1, 1], [], []>} : vector<512x36xbf16>, vector<36x128xbf16>, vector<512x128xf32> -> vector<512x128xf32>
    %c0_3 = arith.constant 0 : index
    %c0_4 = arith.constant 0 : index
    %3 = vector.load %arg3[%c0_3, %c0_4] : memref<1x128xf32, #tpu.memory_space<vmem>>, vector<1x128xf32>
    %4 = vector.broadcast %3 : vector<1x128xf32> to vector<512x128xf32>
    %5 = arith.mulf %2, %4 : vector<512x128xf32>
    %c0_5 = arith.constant 0 : index
    %c0_6 = arith.constant 0 : index
    %6 = vector.load %arg4[%c0_5, %c0_6] : memref<1x128xf32, #tpu.memory_space<vmem>>, vector<1x128xf32>
    %7 = vector.broadcast %6 : vector<1x128xf32> to vector<512x128xf32>
    %8 = arith.addf %5, %7 : vector<512x128xf32>
    %cst_7 = arith.constant 0.000000e+00 : f32
    %9 = vector.broadcast %cst_7 : f32 to vector<512x128xf32>
    %10 = arith.maximumf %8, %9 : vector<512x128xf32>
    %11 = arith.truncf %10 : vector<512x128xf32> to vector<512x128xbf16>
    %c0_8 = arith.constant 0 : index
    %c0_9 = arith.constant 0 : index
    %12 = vector.load %arg5[%c0_8, %c0_9] : memref<512x128xbf16, #tpu.memory_space<vmem>>, vector<512x128xbf16>
    tpu.vector_store %arg5[%c0_8, %c0_9], %11 {strides = array<i32>} : memref<512x128xbf16, #tpu.memory_space<vmem>>, vector<512x128xbf16>,
    return
  }
  func.func @transform_0(%arg0: i32) -> (i32, i32) {
    %c0_i32 = arith.constant 0 : i32
    %c0_i32_0 = arith.constant 0 : i32
    return %arg0, %c0_i32 : i32, i32
  }
  func.func @transform_1(%arg0: i32) -> (i32, i32) {
    %c0_i32 = arith.constant 0 : i32
    %c0_i32_0 = arith.constant 0 : i32
    %c0_i32_1 = arith.constant 0 : i32
    return %c0_i32, %c0_i32_0 : i32, i32
  }
  func.func @transform_2(%arg0: i32) -> (i32, i32) {
    %c0_i32 = arith.constant 0 : i32
    %c0_i32_0 = arith.constant 0 : i32
    %c0_i32_1 = arith.constant 0 : i32
    return %c0_i32, %c0_i32_0 : i32, i32
  }
  func.func @transform_3(%arg0: i32) -> (i32, i32) {
    %c0_i32 = arith.constant 0 : i32
    %c0_i32_0 = arith.constant 0 : i32
    %c0_i32_1 = arith.constant 0 : i32
    return %c0_i32, %c0_i32_0 : i32, i32
  }
  func.func @transform_4(%arg0: i32) -> (i32, i32) {
    %c0_i32 = arith.constant 0 : i32
    %c0_i32_0 = arith.constant 0 : i32
    return %arg0, %c0_i32 : i32, i32
  }
}

</mosaic_0001>

<llo_original>
// kernel: squeeze.2
$region0: #{squeeze.2}
  %s0 = inlined_call_operand.vmem [shape: f32[32], index: 0, kind: input, shape index: {}]
  %s1 = inlined_call_operand.vmem [shape: f32[4,8], index: 1, kind: output, shape index: {}]
  $region1: #{squeeze.2} parent=0
    #allocation0 [shape = 'u8[4096]{0}', space=vmem, size = 0x1000, scoped, tag = 'scoped mem for output reshape']
    #allocation1 [shape = 'u8[4096]{0}', space=vmem, size = 0x1000, scoped, tag = 'scoped mem for input reshape']
    %s3 = ssub.s32 2, 1
    %v4 = vld [vmem:[%s0] sm:%s3]
    %5 = vst [vmem:[#allocation1] sm:%s3] %v4
    %v6 = vld [vmem:[#allocation1] sm:$0x1]
    %vm7 = vcmask 64512
    %8 = vst.msk [vmem:[#allocation0] sm:$0x1] %vm7, %v6
    %v9 = vld [vmem:[#allocation1] sm:$0x1]
    %10 = vrot.lane.b32.xlu0 %v9, 120
    %v11 = vpop.permute.xlu0 %10
    %vm12 = vcmask 64512
    %s13 = scalar_lea.vmem [#allocation0], 1
    %14 = vst.msk [vmem:[%s13] sm:$0x1] %vm12, %v11
    %v15 = vld [vmem:[#allocation1] sm:$0x1]
    %16 = vrot.lane.b32.xlu0 %v15, 112
    %v17 = vpop.permute.xlu0 %16
    %vm18 = vcmask 64512
    %s19 = scalar_lea.vmem [#allocation0], 2
    %20 = vst.msk [vmem:[%s19] sm:$0x1] %vm18, %v17
    %v21 = vld [vmem:[#allocation1] sm:$0x1]
    %22 = vrot.lane.b32.xlu0 %v21, 104
    %v23 = vpop.permute.xlu0 %22
    %vm24 = vcmask 64512
    %s25 = scalar_lea.vmem [#allocation0], 3
    %26 = vst.msk [vmem:[%s25] sm:$0x1] %vm24, %v23
    %s28 = ssub.s32 16, 1
    %v29 = vld [vmem:[#allocation0] sm:%s28]
    %s31 = ssub.s32 16, 1
    %32 = vst [vmem:[%s1] sm:%s31] %v29

// kernel: up_conv_forward.3
$region0: #{up_conv_forward.3}
  #allocation0 [shape = 'u32[]', space=smem, size = 0x4, offset = 0x4, fixed_abs, tag = 'smem constant byte address 0x4 - core index']
  #allocation1 [shape = 'u32[72,128]{1,0:T(1,128)}', space=vmem, size = 0x9000, scoped, tag = 'internal scratch']
  %s0 = inlined_call_operand.vmem [shape: bf16[512,36], index: 0, kind: input, shape index: {}]
  %s1 = inlined_call_operand.vmem [shape: bf16[36,128], index: 1, kind: input, shape index: {}]
  %s2 = inlined_call_operand.vmem [shape: f32[1,128], index: 2, kind: input, shape index: {}]
  %s3 = inlined_call_operand.vmem [shape: f32[1,128], index: 3, kind: input, shape index: {}]
  %s4 = inlined_call_operand.vmem [shape: bf16[512,128], index: 4, kind: output, shape index: {}]
  %s5 = sld [smem:[#allocation0]]
  $region26: #{up_conv_forward.3} parent=0
    _
  %s7 = ssub.s32 1, %s5
  %s8 = scalar_select 0, %s7, %s5
  // Predicated region
  $region2: #{up_conv_forward.3} parent=0 // pred_check
    _
  $region3: #{up_conv_forward.3} parent=0 // pred_check_branch
    %10 = sbr.rel (0) target = $region5
  $region4: #{up_conv_forward.3} parent=0 // pred_region
    _
  $region5: #{up_conv_forward.3} parent=0 // pred_fallthru
    _
  // Predicated region
  $region6: #{up_conv_forward.3} parent=0 // pred_check
    _
  $region7: #{up_conv_forward.3} parent=0 // pred_check_branch
    %12 = sbr.rel (0) target = $region9
  $region8: #{up_conv_forward.3} parent=0 // pred_region
    _
  $region9: #{up_conv_forward.3} parent=0 // pred_fallthru
    _
  // Predicated region
  $region10: #{up_conv_forward.3} parent=0 // pred_check
    _
  $region11: #{up_conv_forward.3} parent=0 // pred_check_branch
    %14 = sbr.rel (0) target = $region13
  $region12: #{up_conv_forward.3} parent=0 // pred_region
    _
  $region13: #{up_conv_forward.3} parent=0 // pred_fallthru
    _
  // Predicated region
  $region14: #{up_conv_forward.3} parent=0 // pred_check
    _
  $region15: #{up_conv_forward.3} parent=0 // pred_check_branch
    %16 = sbr.rel (0) target = $region17
  $region16: #{up_conv_forward.3} parent=0 // pred_region
    _
  $region17: #{up_conv_forward.3} parent=0 // pred_fallthru
    _
  %v18 = vld [vmem:[%s0] sm:$0xf]
  %v19 = vld [vmem:[%s0 + $0x4] sm:$0xf]
  %v20 = vld [vmem:[%s0 + $0x8] sm:$0xf]
  %v21 = vld [vmem:[%s0 + $0xc] sm:$0xf]
  %v22 = vld [vmem:[%s0 + $0x10] sm:$0xf]
  %v23 = vld [vmem:[%s0 + $0x14] sm:$0xf]
  %v24 = vld [vmem:[%s0 + $0x18] sm:$0xf]
  %v25 = vld [vmem:[%s0 + $0x1c] sm:$0xf]
  %v26 = vld [vmem:[%s0 + $0x20] sm:$0xf]
  %v27 = vld [vmem:[%s0 + $0x24] sm:$0xf]
  %v28 = vld [vmem:[%s0 + $0x28] sm:$0xf]
  %v29 = vld [vmem:[%s0 + $0x2c] sm:$0xf]
  %v30 = vld [vmem:[%s0 + $0x30] sm:$0xf]
  %v31 = vld [vmem:[%s0 + $0x34] sm:$0xf]
  %v32 = vld [vmem:[%s0 + $0x38] sm:$0xf]
  %v33 = vld [vmem:[%s0 + $0x3c] sm:$0xf]
  %v34 = vld [vmem:[%s0 + $0x40] sm:$0xf]
  %v35 = vld [vmem:[%s0 + $0x44] sm:$0xf]
  %v36 = vld [vmem:[%s0 + $0x48] sm:$0xf]
  %v37 = vld [vmem:[%s0 + $0x4c] sm:$0xf]
  %v38 = vld [vmem:[%s0 + $0x50] sm:$0xf]
  %v39 = vld [vmem:[%s0 + $0x54] sm:$0xf]
  %v40 = vld [vmem:[%s0 + $0x58] sm:$0xf]
  %v41 = vld [vmem:[%s0 + $0x5c] sm:$0xf]
  %v42 = vld [vmem:[%s0 + $0x60] sm:$0xf]
  %v43 = vld [vmem:[%s0 + $0x64] sm:$0xf]
  %v44 = vld [vmem:[%s0 + $0x68] sm:$0xf]
  %v45 = vld [vmem:[%s0 + $0x6c] sm:$0xf]
  %v46 = vld [vmem:[%s0 + $0x70] sm:$0xf]
  %v47 = vld [vmem:[%s0 + $0x74] sm:$0xf]
  %v48 = vld [vmem:[%s0 + $0x78] sm:$0xf]
  %v49 = vld [vmem:[%s0 + $0x7c] sm:$0xf]
  %v50 = vld [vmem:[%s0 + $0x80] sm:$0xf]
  %v51 = vld [vmem:[%s0 + $0x84] sm:$0xf]
  %v52 = vld [vmem:[%s0 + $0x88] sm:$0xf]
  %v53 = vld [vmem:[%s0 + $0x8c] sm:$0xf]
  %v54 = vld [vmem:[%s0 + $0x90] sm:$0xf]
  %v55 = vld [vmem:[%s0 + $0x94] sm:$0xf]
  %v56 = vld [vmem:[%s0 + $0x98] sm:$0xf]
  %v57 = vld [vmem:[%s0 + $0x9c] sm:$0xf]
  %v58 = vld [vmem:[%s0 + $0xa0] sm:$0xf]
  %v59 = vld [vmem:[%s0 + $0xa4] sm:$0xf]
  %v60 = vld [vmem:[%s0 + $0xa8] sm:$0xf]
  %v61 = vld [vmem:[%s0 + $0xac] sm:$0xf]
  %v62 = vld [vmem:[%s0 + $0xb0] sm:$0xf]
  %v63 = vld [vmem:[%s0 + $0xb4] sm:$0xf]
  %v64 = vld [vmem:[%s0 + $0xb8] sm:$0xf]
  %v65 = vld [vmem:[%s0 + $0xbc] sm:$0xf]
  %v66 = vld [vmem:[%s0 + $0xc0] sm:$0xf]
  %v67 = vld [vmem:[%s0 + $0xc4] sm:$0xf]
  %v68 = vld [vmem:[%s0 + $0xc8] sm:$0xf]
  %v69 = vld [vmem:[%s0 + $0xcc] sm:$0xf]
  %v70 = vld [vmem:[%s0 + $0xd0] sm:$0xf]
  %v71 = vld [vmem:[%s0 + $0xd4] sm:$0xf]
  %v72 = vld [vmem:[%s0 + $0xd8] sm:$0xf]
  %v73 = vld [vmem:[%s0 + $0xdc] sm:$0xf]
  %v74 = vld [vmem:[%s0 + $0xe0] sm:$0xf]
  %v75 = vld [vmem:[%s0 + $0xe4] sm:$0xf]
  %v76 = vld [vmem:[%s0 + $0xe8] sm:$0xf]
  %v77 = vld [vmem:[%s0 + $0xec] sm:$0xf]
  %v78 = vld [vmem:[%s0 + $0xf0] sm:$0xf]
  %v79 = vld [vmem:[%s0 + $0xf4] sm:$0xf]
  %v80 = vld [vmem:[%s0 + $0xf8] sm:$0xf]
  %v81 = vld [vmem:[%s0 + $0xfc] sm:$0xf]
  %v82 = vld [vmem:[%s1] sm:$0xf]
  %v83 = vld [vmem:[%s1 + $0x4] sm:$0xf]
  %v84 = vld [vmem:[%s1 + $0x8] sm:$0xf]
  %v85 = vld [vmem:[%s1 + $0xc] sm:$0xf]
  %v86 = vld [vmem:[%s1 + $0x10] sm:$0x3]
  %v151 = vunpack.c.l.b16 %v18
  %v152 = vunpack.c.l.b16 %v19
  %v153 = vunpack.c.l.b16 %v20
  %v154 = vunpack.c.l.b16 %v21
  %v155 = vunpack.c.l.b16 %v22
  %v156 = vunpack.c.l.b16 %v23
  %v157 = vunpack.c.l.b16 %v24
  %v158 = vunpack.c.l.b16 %v25
  %v159 = vunpack.c.l.b16 %v26
  %v160 = vunpack.c.l.b16 %v27
  %v161 = vunpack.c.l.b16 %v28
  %v162 = vunpack.c.l.b16 %v29
  %v163 = vunpack.c.l.b16 %v30
  %v164 = vunpack.c.l.b16 %v31
  %v165 = vunpack.c.l.b16 %v32
  %v166 = vunpack.c.l.b16 %v33
  %v167 = vunpack.c.l.b16 %v34
  %v168 = vunpack.c.l.b16 %v35
  %v169 = vunpack.c.l.b16 %v36
  %v170 = vunpack.c.l.b16 %v37
  %v171 = vunpack.c.l.b16 %v38
  %v172 = vunpack.c.l.b16 %v39
  %v173 = vunpack.c.l.b16 %v40
  %v174 = vunpack.c.l.b16 %v41
  %v175 = vunpack.c.l.b16 %v42
  %v176 = vunpack.c.l.b16 %v43
  %v177 = vunpack.c.l.b16 %v44
  %v178 = vunpack.c.l.b16 %v45
  %v179 = vunpack.c.l.b16 %v46
  %v180 = vunpack.c.l.b16 %v47
  %v181 = vunpack.c.l.b16 %v48
  %v182 = vunpack.c.l.b16 %v49
  %v183 = vunpack.c.l.b16 %v50
  %v184 = vunpack.c.l.b16 %v51
  %v185 = vunpack.c.l.b16 %v52
  %v186 = vunpack.c.l.b16 %v53
  %v187 = vunpack.c.l.b16 %v54
  %v188 = vunpack.c.l.b16 %v55
  %v189 = vunpack.c.l.b16 %v56
  %v190 = vunpack.c.l.b16 %v57
  %v191 = vunpack.c.l.b16 %v58
  %v192 = vunpack.c.l.b16 %v59
  %v193 = vunpack.c.l.b16 %v60
  %v194 = vunpack.c.l.b16 %v61
  %v195 = vunpack.c.l.b16 %v62
  %v196 = vunpack.c.l.b16 %v63
  %v197 = vunpack.c.l.b16 %v64
  %v198 = vunpack.c.l.b16 %v65
  %v199 = vunpack.c.l.b16 %v66
  %v200 = vunpack.c.l.b16 %v67
  %v201 = vunpack.c.l.b16 %v68
  %v202 = vunpack.c.l.b16 %v69
  %v203 = vunpack.c.l.b16 %v70
  %v204 = vunpack.c.l.b16 %v71
  %v205 = vunpack.c.l.b16 %v72
  %v206 = vunpack.c.l.b16 %v73
  %v207 = vunpack.c.l.b16 %v74
  %v208 = vunpack.c.l.b16 %v75
  %v209 = vunpack.c.l.b16 %v76
  %v210 = vunpack.c.l.b16 %v77
  %v211 = vunpack.c.l.b16 %v78
  %v212 = vunpack.c.l.b16 %v79
  %v213 = vunpack.c.l.b16 %v80
  %v214 = vunpack.c.l.b16 %v81
  %v215 = vpack.c.b16 %v152, %v151
  %v216 = vpack.c.b16 %v154, %v153
  %v217 = vpack.c.b16 %v156, %v155
  %v218 = vpack.c.b16 %v158, %v157
  %v219 = vpack.c.b16 %v160, %v159
  %v220 = vpack.c.b16 %v162, %v161
  %v221 = vpack.c.b16 %v164, %v163
  %v222 = vpack.c.b16 %v166, %v165
  %v223 = vpack.c.b16 %v168, %v167
  %v224 = vpack.c.b16 %v170, %v169
  %v225 = vpack.c.b16 %v172, %v171
  %v226 = vpack.c.b16 %v174, %v173
  %v227 = vpack.c.b16 %v176, %v175
  %v228 = vpack.c.b16 %v178, %v177
  %v229 = vpack.c.b16 %v180, %v179
  %v230 = vpack.c.b16 %v182, %v181
  %v231 = vpack.c.b16 %v184, %v183
  %v232 = vpack.c.b16 %v186, %v185
  %v233 = vpack.c.b16 %v188, %v187
  %v234 = vpack.c.b16 %v190, %v189
  %v235 = vpack.c.b16 %v192, %v191
  %v236 = vpack.c.b16 %v194, %v193
  %v237 = vpack.c.b16 %v196, %v195
  %v238 = vpack.c.b16 %v198, %v197
  %v239 = vpack.c.b16 %v200, %v199
  %v240 = vpack.c.b16 %v202, %v201
  %v241 = vpack.c.b16 %v204, %v203
  %v242 = vpack.c.b16 %v206, %v205
  %v243 = vpack.c.b16 %v208, %v207
  %v244 = vpack.c.b16 %v210, %v209
  %v245 = vpack.c.b16 %v212, %v211
  %v246 = vpack.c.b16 %v214, %v213
  %v252 = vunpack.c.l.b16 %v82
  %v253 = vunpack.c.l.b16 %v83
  %v254 = vunpack.c.l.b16 %v84
  %v255 = vunpack.c.l.b16 %v85
  %v256 = vunpack.c.l.b16 %v86
  %v257 = vpack.c.b16 %v253, %v252
  %v258 = vpack.c.b16 %v255, %v254
  %v259 = vpack.c.b16 %v256, %v256
  %vm262 = vcmask 293888
  %v264 = vsel %vm262, %v215, 0
  %v267 = vsel %vm262, %v216, 0
  %v270 = vsel %vm262, %v217, 0
  %v273 = vsel %vm262, %v218, 0
  %v276 = vsel %vm262, %v219, 0
  %v279 = vsel %vm262, %v220, 0
  %v282 = vsel %vm262, %v221, 0
  %v285 = vsel %vm262, %v222, 0
  %v288 = vsel %vm262, %v223, 0
  %v291 = vsel %vm262, %v224, 0
  %v294 = vsel %vm262, %v225, 0
  %v297 = vsel %vm262, %v226, 0
  %v300 = vsel %vm262, %v227, 0
  %v303 = vsel %vm262, %v228, 0
  %v306 = vsel %vm262, %v229, 0
  %v309 = vsel %vm262, %v230, 0
  %v312 = vsel %vm262, %v231, 0
  %v315 = vsel %vm262, %v232, 0
  %v318 = vsel %vm262, %v233, 0
  %v321 = vsel %vm262, %v234, 0
  %v324 = vsel %vm262, %v235, 0
  %v327 = vsel %vm262, %v236, 0
  %v330 = vsel %vm262, %v237, 0
  %v333 = vsel %vm262, %v238, 0
  %v336 = vsel %vm262, %v239, 0
  %v339 = vsel %vm262, %v240, 0
  %v342 = vsel %vm262, %v241, 0
  %v345 = vsel %vm262, %v242, 0
  %v348 = vsel %vm262, %v243, 0
  %v351 = vsel %vm262, %v244, 0
  %v354 = vsel %vm262, %v245, 0
  %v357 = vsel %vm262, %v246, 0
  %vm359 = vcmask 1041408
  %v361 = vsel %vm359, %v259, 0
  %363 = vmatpush.bf16.msra.mxu0 0
  %364 = vmatpush.bf16.msra.mxu0 0
  %365 = vmatpush.bf16.msra.mxu0 0
  %366 = vmatpush.bf16.msra.mxu0 0
  %367 = vmatpush.bf16.msra.mxu0 0
  %368 = vmatpush.bf16.msra.mxu0 %v361
  %369 = vmatpush.bf16.msra.mxu0 %v258
  %370 = vmatpush.bf16.msra.mxu0 %v257
  %371 = vmatmul.bf16.gmra.mxu0 %v264
  %v372 = vpop.f32.mrf.mxu0
  %v373 = vadd.f32 0.0, %v372
  %v374 = vpop.f32.mrf.mxu0
  %v375 = vadd.f32 0.0, %v374
  %376 = vmatmul.bf16.gmra.mxu0 %v267
  %v377 = vpop.f32.mrf.mxu0
  %v378 = vadd.f32 0.0, %v377
  %v379 = vpop.f32.mrf.mxu0
  %v380 = vadd.f32 0.0, %v379
  %381 = vmatmul.bf16.gmra.mxu0 %v270
  %v382 = vpop.f32.mrf.mxu0
  %v383 = vadd.f32 0.0, %v382
  %v384 = vpop.f32.mrf.mxu0
  %v385 = vadd.f32 0.0, %v384
  %386 = vmatmul.bf16.gmra.mxu0 %v273
  %v387 = vpop.f32.mrf.mxu0
  %v388 = vadd.f32 0.0, %v387
  %v389 = vpop.f32.mrf.mxu0
  %v390 = vadd.f32 0.0, %v389
  %391 = vmatmul.bf16.gmra.mxu0 %v276
  %v392 = vpop.f32.mrf.mxu0
  %v393 = vadd.f32 0.0, %v392
  %v394 = vpop.f32.mrf.mxu0
  %v395 = vadd.f32 0.0, %v394
  %396 = vmatmul.bf16.gmra.mxu0 %v279
  %v397 = vpop.f32.mrf.mxu0
  %v398 = vadd.f32 0.0, %v397
  %v399 = vpop.f32.mrf.mxu0
  %v400 = vadd.f32 0.0, %v399
  %401 = vmatmul.bf16.gmra.mxu0 %v282
  %v402 = vpop.f32.mrf.mxu0
  %v403 = vadd.f32 0.0, %v402
  %v404 = vpop.f32.mrf.mxu0
  %v405 = vadd.f32 0.0, %v404
  %406 = vmatmul.bf16.gmra.mxu0 %v285
  %v407 = vpop.f32.mrf.mxu0
  %v408 = vadd.f32 0.0, %v407
  %v409 = vpop.f32.mrf.mxu0
  %v410 = vadd.f32 0.0, %v409
  %411 = vmatmul.bf16.gmra.mxu0 %v288
  %v412 = vpop.f32.mrf.mxu0
  %v413 = vadd.f32 0.0, %v412
  %v414 = vpop.f32.mrf.mxu0
  %v415 = vadd.f32 0.0, %v414
  %416 = vmatmul.bf16.gmra.mxu0 %v291
  %v417 = vpop.f32.mrf.mxu0
  %v418 = vadd.f32 0.0, %v417
  %v419 = vpop.f32.mrf.mxu0
  %v420 = vadd.f32 0.0, %v419
  %421 = vmatmul.bf16.gmra.mxu0 %v294
  %v422 = vpop.f32.mrf.mxu0
  %v423 = vadd.f32 0.0, %v422
  %v424 = vpop.f32.mrf.mxu0
  %v425 = vadd.f32 0.0, %v424
  %426 = vmatmul.bf16.gmra.mxu0 %v297
  %v427 = vpop.f32.mrf.mxu0
  %v428 = vadd.f32 0.0, %v427
  %v429 = vpop.f32.mrf.mxu0
  %v430 = vadd.f32 0.0, %v429
  %431 = vmatmul.bf16.gmra.mxu0 %v300
  %v432 = vpop.f32.mrf.mxu0
  %v433 = vadd.f32 0.0, %v432
  %v434 = vpop.f32.mrf.mxu0
  %v435 = vadd.f32 0.0, %v434
  %436 = vmatmul.bf16.gmra.mxu0 %v303
  %v437 = vpop.f32.mrf.mxu0
  %v438 = vadd.f32 0.0, %v437
  %v439 = vpop.f32.mrf.mxu0
  %v440 = vadd.f32 0.0, %v439
  %441 = vmatmul.bf16.gmra.mxu0 %v306
  %v442 = vpop.f32.mrf.mxu0
  %v443 = vadd.f32 0.0, %v442
  %v444 = vpop.f32.mrf.mxu0
  %v445 = vadd.f32 0.0, %v444
  %446 = vmatmul.bf16.gmra.mxu0 %v309
  %v447 = vpop.f32.mrf.mxu0
  %v448 = vadd.f32 0.0, %v447
  %v449 = vpop.f32.mrf.mxu0
  %v450 = vadd.f32 0.0, %v449
  %451 = vmatmul.bf16.gmra.mxu0 %v312
  %v452 = vpop.f32.mrf.mxu0
  %v453 = vadd.f32 0.0, %v452
  %v454 = vpop.f32.mrf.mxu0
  %v455 = vadd.f32 0.0, %v454
  %456 = vmatmul.bf16.gmra.mxu0 %v315
  %v457 = vpop.f32.mrf.mxu0
  %v458 = vadd.f32 0.0, %v457
  %v459 = vpop.f32.mrf.mxu0
  %v460 = vadd.f32 0.0, %v459
  %461 = vmatmul.bf16.gmra.mxu0 %v318
  %v462 = vpop.f32.mrf.mxu0
  %v463 = vadd.f32 0.0, %v462
  %v464 = vpop.f32.mrf.mxu0
  %v465 = vadd.f32 0.0, %v464
  %466 = vmatmul.bf16.gmra.mxu0 %v321
  %v467 = vpop.f32.mrf.mxu0
  %v468 = vadd.f32 0.0, %v467
  %v469 = vpop.f32.mrf.mxu0
  %v470 = vadd.f32 0.0, %v469
  %471 = vmatmul.bf16.gmra.mxu0 %v324
  %v472 = vpop.f32.mrf.mxu0
  %v473 = vadd.f32 0.0, %v472
  %v474 = vpop.f32.mrf.mxu0
  %v475 = vadd.f32 0.0, %v474
  %476 = vmatmul.bf16.gmra.mxu0 %v327
  %v477 = vpop.f32.mrf.mxu0
  %v478 = vadd.f32 0.0, %v477
  %v479 = vpop.f32.mrf.mxu0
  %v480 = vadd.f32 0.0, %v479
  %481 = vmatmul.bf16.gmra.mxu0 %v330
  %v482 = vpop.f32.mrf.mxu0
  %v483 = vadd.f32 0.0, %v482
  %v484 = vpop.f32.mrf.mxu0
  %v485 = vadd.f32 0.0, %v484
  %486 = vmatmul.bf16.gmra.mxu0 %v333
  %v487 = vpop.f32.mrf.mxu0
  %v488 = vadd.f32 0.0, %v487
  %v489 = vpop.f32.mrf.mxu0
  %v490 = vadd.f32 0.0, %v489
  %491 = vmatmul.bf16.gmra.mxu0 %v336
  %v492 = vpop.f32.mrf.mxu0
  %v493 = vadd.f32 0.0, %v492
  %v494 = vpop.f32.mrf.mxu0
  %v495 = vadd.f32 0.0, %v494
  %496 = vmatmul.bf16.gmra.mxu0 %v339
  %v497 = vpop.f32.mrf.mxu0
  %v498 = vadd.f32 0.0, %v497
  %v499 = vpop.f32.mrf.mxu0
  %v500 = vadd.f32 0.0, %v499
  %501 = vmatmul.bf16.gmra.mxu0 %v342
  %v502 = vpop.f32.mrf.mxu0
  %v503 = vadd.f32 0.0, %v502
  %v504 = vpop.f32.mrf.mxu0
  %v505 = vadd.f32 0.0, %v504
  %506 = vmatmul.bf16.gmra.mxu0 %v345
  %v507 = vpop.f32.mrf.mxu0
  %v508 = vadd.f32 0.0, %v507
  %v509 = vpop.f32.mrf.mxu0
  %v510 = vadd.f32 0.0, %v509
  %511 = vmatmul.bf16.gmra.mxu0 %v348
  %v512 = vpop.f32.mrf.mxu0
  %v513 = vadd.f32 0.0, %v512
  %v514 = vpop.f32.mrf.mxu0
  %v515 = vadd.f32 0.0, %v514
  %516 = vmatmul.bf16.gmra.mxu0 %v351
  %v517 = vpop.f32.mrf.mxu0
  %v518 = vadd.f32 0.0, %v517
  %v519 = vpop.f32.mrf.mxu0
  %v520 = vadd.f32 0.0, %v519
  %521 = vmatmul.bf16.gmra.mxu0 %v354
  %v522 = vpop.f32.mrf.mxu0
  %v523 = vadd.f32 0.0, %v522
  %v524 = vpop.f32.mrf.mxu0
  %v525 = vadd.f32 0.0, %v524
  %526 = vmatmul.bf16.gmra.mxu0 %v357
  %v527 = vpop.f32.mrf.mxu0
  %v528 = vadd.f32 0.0, %v527
  %v529 = vpop.f32.mrf.mxu0
  %v530 = vadd.f32 0.0, %v529
  %531 = vdwg.mxu0
  %v532 = vld [vmem:[%s2] sm:$0x1]
  %v534 = vperm.slane %v532, 0
  %v536 = vmul.f32 %v373, %v534
  %v537 = vmul.f32 %v375, %v534
  %v538 = vmul.f32 %v378, %v534
  %v539 = vmul.f32 %v380, %v534
  %v540 = vmul.f32 %v383, %v534
  %v541 = vmul.f32 %v385, %v534
  %v542 = vmul.f32 %v388, %v534
  %v543 = vmul.f32 %v390, %v534
  %v544 = vmul.f32 %v393, %v534
  %v545 = vmul.f32 %v395, %v534
  %v546 = vmul.f32 %v398, %v534
  %v547 = vmul.f32 %v400, %v534
  %v548 = vmul.f32 %v403, %v534
  %v549 = vmul.f32 %v405, %v534
  %v550 = vmul.f32 %v408, %v534
  %v551 = vmul.f32 %v410, %v534
  %v552 = vmul.f32 %v413, %v534
  %v553 = vmul.f32 %v415, %v534
  %v554 = vmul.f32 %v418, %v534
  %v555 = vmul.f32 %v420, %v534
  %v556 = vmul.f32 %v423, %v534
  %v557 = vmul.f32 %v425, %v534
  %v558 = vmul.f32 %v428, %v534
  %v559 = vmul.f32 %v430, %v534
  %v560 = vmul.f32 %v433, %v534
  %v561 = vmul.f32 %v435, %v534
  %v562 = vmul.f32 %v438, %v534
  %v563 = vmul.f32 %v440, %v534
  %v564 = vmul.f32 %v443, %v534
  %v565 = vmul.f32 %v445, %v534
  %v566 = vmul.f32 %v448, %v534
  %v567 = vmul.f32 %v450, %v534
  %v568 = vmul.f32 %v453, %v534
  %v569 = vmul.f32 %v455, %v534
  %v570 = vmul.f32 %v458, %v534
  %v571 = vmul.f32 %v460, %v534
  %v572 = vmul.f32 %v463, %v534
  %v573 = vmul.f32 %v465, %v534
  %v574 = vmul.f32 %v468, %v534
  %v575 = vmul.f32 %v470, %v534
  %v576 = vmul.f32 %v473, %v534
  %v577 = vmul.f32 %v475, %v534
  %v578 = vmul.f32 %v478, %v534
  %v579 = vmul.f32 %v480, %v534
  %v580 = vmul.f32 %v483, %v534
  %v581 = vmul.f32 %v485, %v534
  %v582 = vmul.f32 %v488, %v534
  %v583 = vmul.f32 %v490, %v534
  %v584 = vmul.f32 %v493, %v534
  %v585 = vmul.f32 %v495, %v534
  %v586 = vmul.f32 %v498, %v534
  %v587 = vmul.f32 %v500, %v534
  %v588 = vmul.f32 %v503, %v534
  %v589 = vmul.f32 %v505, %v534
  %v590 = vmul.f32 %v508, %v534
  %v591 = vmul.f32 %v510, %v534
  %v592 = vmul.f32 %v513, %v534
  %v593 = vmul.f32 %v515, %v534
  %v594 = vmul.f32 %v518, %v534
  %v595 = vmul.f32 %v520, %v534
  %v596 = vmul.f32 %v523, %v534
  %v597 = vmul.f32 %v525, %v534
  %v598 = vmul.f32 %v528, %v534
  %v599 = vmul.f32 %v530, %v534
  %v600 = vld [vmem:[%s3] sm:$0x1]
  %v602 = vperm.slane %v600, 0
  %v604 = vadd.f32 %v536, %v602
  %v605 = vadd.f32 %v537, %v602
  %v606 = vadd.f32 %v538, %v602
  %v607 = vadd.f32 %v539, %v602
  %v608 = vadd.f32 %v540, %v602
  %v609 = vadd.f32 %v541, %v602
  %v610 = vadd.f32 %v542, %v602
  %v611 = vadd.f32 %v543, %v602
  %v612 = vadd.f32 %v544, %v602
  %v613 = vadd.f32 %v545, %v602
  %v614 = vadd.f32 %v546, %v602
  %v615 = vadd.f32 %v547, %v602
  %v616 = vadd.f32 %v548, %v602
  %v617 = vadd.f32 %v549, %v602
  %v618 = vadd.f32 %v550, %v602
  %v619 = vadd.f32 %v551, %v602
  %v620 = vadd.f32 %v552, %v602
  %v621 = vadd.f32 %v553, %v602
  %v622 = vadd.f32 %v554, %v602
  %v623 = vadd.f32 %v555, %v602
  %v624 = vadd.f32 %v556, %v602
  %v625 = vadd.f32 %v557, %v602
  %v626 = vadd.f32 %v558, %v602
  %v627 = vadd.f32 %v559, %v602
  %v628 = vadd.f32 %v560, %v602
  %v629 = vadd.f32 %v561, %v602
  %v630 = vadd.f32 %v562, %v602
  %v631 = vadd.f32 %v563, %v602
  %v632 = vadd.f32 %v564, %v602
  %v633 = vadd.f32 %v565, %v602
  %v634 = vadd.f32 %v566, %v602
  %v635 = vadd.f32 %v567, %v602
  %v636 = vadd.f32 %v568, %v602
  %v637 = vadd.f32 %v569, %v602
  %v638 = vadd.f32 %v570, %v602
  %v639 = vadd.f32 %v571, %v602
  %v640 = vadd.f32 %v572, %v602
  %v641 = vadd.f32 %v573, %v602
  %v642 = vadd.f32 %v574, %v602
  %v643 = vadd.f32 %v575, %v602
  %v644 = vadd.f32 %v576, %v602
  %v645 = vadd.f32 %v577, %v602
  %v646 = vadd.f32 %v578, %v602
  %v647 = vadd.f32 %v579, %v602
  %v648 = vadd.f32 %v580, %v602
  %v649 = vadd.f32 %v581, %v602
  %v650 = vadd.f32 %v582, %v602
  %v651 = vadd.f32 %v583, %v602
  %v652 = vadd.f32 %v584, %v602
  %v653 = vadd.f32 %v585, %v602
  %v654 = vadd.f32 %v586, %v602
  %v655 = vadd.f32 %v587, %v602
  %v656 = vadd.f32 %v588, %v602
  %v657 = vadd.f32 %v589, %v602
  %v658 = vadd.f32 %v590, %v602
  %v659 = vadd.f32 %v591, %v602
  %v660 = vadd.f32 %v592, %v602
  %v661 = vadd.f32 %v593, %v602
  %v662 = vadd.f32 %v594, %v602
  %v663 = vadd.f32 %v595, %v602
  %v664 = vadd.f32 %v596, %v602
  %v665 = vadd.f32 %v597, %v602
  %v666 = vadd.f32 %v598, %v602
  %v667 = vadd.f32 %v599, %v602
  %v668 = vmax.f32 %v604, 0.0
  %v669 = vmax.f32 %v605, 0.0
  %v670 = vmax.f32 %v606, 0.0
  %v671 = vmax.f32 %v607, 0.0
  %v672 = vmax.f32 %v608, 0.0
  %v673 = vmax.f32 %v609, 0.0
  %v674 = vmax.f32 %v610, 0.0
  %v675 = vmax.f32 %v611, 0.0
  %v676 = vmax.f32 %v612, 0.0
  %v677 = vmax.f32 %v613, 0.0
  %v678 = vmax.f32 %v614, 0.0
  %v679 = vmax.f32 %v615, 0.0
  %v680 = vmax.f32 %v616, 0.0
  %v681 = vmax.f32 %v617, 0.0
  %v682 = vmax.f32 %v618, 0.0
  %v683 = vmax.f32 %v619, 0.0
  %v684 = vmax.f32 %v620, 0.0
  %v685 = vmax.f32 %v621, 0.0
  %v686 = vmax.f32 %v622, 0.0
  %v687 = vmax.f32 %v623, 0.0
  %v688 = vmax.f32 %v624, 0.0
  %v689 = vmax.f32 %v625, 0.0
  %v690 = vmax.f32 %v626, 0.0
  %v691 = vmax.f32 %v627, 0.0
  %v692 = vmax.f32 %v628, 0.0
  %v693 = vmax.f32 %v629, 0.0
  %v694 = vmax.f32 %v630, 0.0
  %v695 = vmax.f32 %v631, 0.0
  %v696 = vmax.f32 %v632, 0.0
  %v697 = vmax.f32 %v633, 0.0
  %v698 = vmax.f32 %v634, 0.0
  %v699 = vmax.f32 %v635, 0.0
  %v700 = vmax.f32 %v636, 0.0
  %v701 = vmax.f32 %v637, 0.0
  %v702 = vmax.f32 %v638, 0.0
  %v703 = vmax.f32 %v639, 0.0
  %v704 = vmax.f32 %v640, 0.0
  %v705 = vmax.f32 %v641, 0.0
  %v706 = vmax.f32 %v642, 0.0
  %v707 = vmax.f32 %v643, 0.0
  %v708 = vmax.f32 %v644, 0.0
  %v709 = vmax.f32 %v645, 0.0
  %v710 = vmax.f32 %v646, 0.0
  %v711 = vmax.f32 %v647, 0.0
  %v712 = vmax.f32 %v648, 0.0
  %v713 = vmax.f32 %v649, 0.0
  %v714 = vmax.f32 %v650, 0.0
  %v715 = vmax.f32 %v651, 0.0
  %v716 = vmax.f32 %v652, 0.0
  %v717 = vmax.f32 %v653, 0.0
  %v718 = vmax.f32 %v654, 0.0
  %v719 = vmax.f32 %v655, 0.0
  %v720 = vmax.f32 %v656, 0.0
  %v721 = vmax.f32 %v657, 0.0
  %v722 = vmax.f32 %v658, 0.0
  %v723 = vmax.f32 %v659, 0.0
  %v724 = vmax.f32 %v660, 0.0
  %v725 = vmax.f32 %v661, 0.0
  %v726 = vmax.f32 %v662, 0.0
  %v727 = vmax.f32 %v663, 0.0
  %v728 = vmax.f32 %v664, 0.0
  %v729 = vmax.f32 %v665, 0.0
  %v730 = vmax.f32 %v666, 0.0
  %v731 = vmax.f32 %v667, 0.0
  %v732 = vpack.c.bf16 %v668, %v668
  %v733 = vpack.c.bf16 %v669, %v669
  %v734 = vpack.c.bf16 %v670, %v670
  %v735 = vpack.c.bf16 %v671, %v671
  %v736 = vpack.c.bf16 %v672, %v672
  %v737 = vpack.c.bf16 %v673, %v673
  %v738 = vpack.c.bf16 %v674, %v674
  %v739 = vpack.c.bf16 %v675, %v675
  %v740 = vpack.c.bf16 %v676, %v676
  %v741 = vpack.c.bf16 %v677, %v677
  %v742 = vpack.c.bf16 %v678, %v678
  %v743 = vpack.c.bf16 %v679, %v679
  %v744 = vpack.c.bf16 %v680, %v680
  %v745 = vpack.c.bf16 %v681, %v681
  %v746 = vpack.c.bf16 %v682, %v682
  %v747 = vpack.c.bf16 %v683, %v683
  %v748 = vpack.c.bf16 %v684, %v684
  %v749 = vpack.c.bf16 %v685, %v685
  %v750 = vpack.c.bf16 %v686, %v686
  %v751 = vpack.c.bf16 %v687, %v687
  %v752 = vpack.c.bf16 %v688, %v688
  %v753 = vpack.c.bf16 %v689, %v689
  %v754 = vpack.c.bf16 %v690, %v690
  %v755 = vpack.c.bf16 %v691, %v691
  %v756 = vpack.c.bf16 %v692, %v692
  %v757 = vpack.c.bf16 %v693, %v693
  %v758 = vpack.c.bf16 %v694, %v694
  %v759 = vpack.c.bf16 %v695, %v695
  %v760 = vpack.c.bf16 %v696, %v696
  %v761 = vpack.c.bf16 %v697, %v697
  %v762 = vpack.c.bf16 %v698, %v698
  %v763 = vpack.c.bf16 %v699, %v699
  %v764 = vpack.c.bf16 %v700, %v700
  %v765 = vpack.c.bf16 %v701, %v701
  %v766 = vpack.c.bf16 %v702, %v702
  %v767 = vpack.c.bf16 %v703, %v703
  %v768 = vpack.c.bf16 %v704, %v704
  %v769 = vpack.c.bf16 %v705, %v705
  %v770 = vpack.c.bf16 %v706, %v706
  %v771 = vpack.c.bf16 %v707, %v707
  %v772 = vpack.c.bf16 %v708, %v708
  %v773 = vpack.c.bf16 %v709, %v709
  %v774 = vpack.c.bf16 %v710, %v710
  %v775 = vpack.c.bf16 %v711, %v711
  %v776 = vpack.c.bf16 %v712, %v712
  %v777 = vpack.c.bf16 %v713, %v713
  %v778 = vpack.c.bf16 %v714, %v714
  %v779 = vpack.c.bf16 %v715, %v715
  %v780 = vpack.c.bf16 %v716, %v716
  %v781 = vpack.c.bf16 %v717, %v717
  %v782 = vpack.c.bf16 %v718, %v718
  %v783 = vpack.c.bf16 %v719, %v719
  %v784 = vpack.c.bf16 %v720, %v720
  %v785 = vpack.c.bf16 %v721, %v721
  %v786 = vpack.c.bf16 %v722, %v722
  %v787 = vpack.c.bf16 %v723, %v723
  %v788 = vpack.c.bf16 %v724, %v724
  %v789 = vpack.c.bf16 %v725, %v725
  %v790 = vpack.c.bf16 %v726, %v726
  %v791 = vpack.c.bf16 %v727, %v727
  %v792 = vpack.c.bf16 %v728, %v728
  %v793 = vpack.c.bf16 %v729, %v729
  %v794 = vpack.c.bf16 %v730, %v730
  %v795 = vpack.c.bf16 %v731, %v731
  %796 = vst [vmem:[%s4] sm:$0xf] %v732
  %797 = vst [vmem:[%s4 + $0x4] sm:$0xf] %v733
  %798 = vst [vmem:[%s4 + $0x8] sm:$0xf] %v734
  %799 = vst [vmem:[%s4 + $0xc] sm:$0xf] %v735
  %800 = vst [vmem:[%s4 + $0x10] sm:$0xf] %v736
  %801 = vst [vmem:[%s4 + $0x14] sm:$0xf] %v737
  %802 = vst [vmem:[%s4 + $0x18] sm:$0xf] %v738
  %803 = vst [vmem:[%s4 + $0x1c] sm:$0xf] %v739
  %804 = vst [vmem:[%s4 + $0x20] sm:$0xf] %v740
  %805 = vst [vmem:[%s4 + $0x24] sm:$0xf] %v741
  %806 = vst [vmem:[%s4 + $0x28] sm:$0xf] %v742
  %807 = vst [vmem:[%s4 + $0x2c] sm:$0xf] %v743
  %808 = vst [vmem:[%s4 + $0x30] sm:$0xf] %v744
  %809 = vst [vmem:[%s4 + $0x34] sm:$0xf] %v745
  %810 = vst [vmem:[%s4 + $0x38] sm:$0xf] %v746
  %811 = vst [vmem:[%s4 + $0x3c] sm:$0xf] %v747
  %812 = vst [vmem:[%s4 + $0x40] sm:$0xf] %v748
  %813 = vst [vmem:[%s4 + $0x44] sm:$0xf] %v749
  %814 = vst [vmem:[%s4 + $0x48] sm:$0xf] %v750
  %815 = vst [vmem:[%s4 + $0x4c] sm:$0xf] %v751
  %816 = vst [vmem:[%s4 + $0x50] sm:$0xf] %v752
  %817 = vst [vmem:[%s4 + $0x54] sm:$0xf] %v753
  %818 = vst [vmem:[%s4 + $0x58] sm:$0xf] %v754
  %819 = vst [vmem:[%s4 + $0x5c] sm:$0xf] %v755
  %820 = vst [vmem:[%s4 + $0x60] sm:$0xf] %v756
  %821 = vst [vmem:[%s4 + $0x64] sm:$0xf] %v757
  %822 = vst [vmem:[%s4 + $0x68] sm:$0xf] %v758
  %823 = vst [vmem:[%s4 + $0x6c] sm:$0xf] %v759
  %824 = vst [vmem:[%s4 + $0x70] sm:$0xf] %v760
  %825 = vst [vmem:[%s4 + $0x74] sm:$0xf] %v761
  %826 = vst [vmem:[%s4 + $0x78] sm:$0xf] %v762
  %827 = vst [vmem:[%s4 + $0x7c] sm:$0xf] %v763
  %828 = vst [vmem:[%s4 + $0x80] sm:$0xf] %v764
  %829 = vst [vmem:[%s4 + $0x84] sm:$0xf] %v765
  %830 = vst [vmem:[%s4 + $0x88] sm:$0xf] %v766
  %831 = vst [vmem:[%s4 + $0x8c] sm:$0xf] %v767
  %832 = vst [vmem:[%s4 + $0x90] sm:$0xf] %v768
  %833 = vst [vmem:[%s4 + $0x94] sm:$0xf] %v769
  %834 = vst [vmem:[%s4 + $0x98] sm:$0xf] %v770
  %835 = vst [vmem:[%s4 + $0x9c] sm:$0xf] %v771
  %836 = vst [vmem:[%s4 + $0xa0] sm:$0xf] %v772
  %837 = vst [vmem:[%s4 + $0xa4] sm:$0xf] %v773
  %838 = vst [vmem:[%s4 + $0xa8] sm:$0xf] %v774
  %839 = vst [vmem:[%s4 + $0xac] sm:$0xf] %v775
  %840 = vst [vmem:[%s4 + $0xb0] sm:$0xf] %v776
  %841 = vst [vmem:[%s4 + $0xb4] sm:$0xf] %v777
  %842 = vst [vmem:[%s4 + $0xb8] sm:$0xf] %v778
  %843 = vst [vmem:[%s4 + $0xbc] sm:$0xf] %v779
  %844 = vst [vmem:[%s4 + $0xc0] sm:$0xf] %v780
  %845 = vst [vmem:[%s4 + $0xc4] sm:$0xf] %v781
  %846 = vst [vmem:[%s4 + $0xc8] sm:$0xf] %v782
  %847 = vst [vmem:[%s4 + $0xcc] sm:$0xf] %v783
  %848 = vst [vmem:[%s4 + $0xd0] sm:$0xf] %v784
  %849 = vst [vmem:[%s4 + $0xd4] sm:$0xf] %v785
  %850 = vst [vmem:[%s4 + $0xd8] sm:$0xf] %v786
  %851 = vst [vmem:[%s4 + $0xdc] sm:$0xf] %v787
  %852 = vst [vmem:[%s4 + $0xe0] sm:$0xf] %v788
  %853 = vst [vmem:[%s4 + $0xe4] sm:$0xf] %v789
  %854 = vst [vmem:[%s4 + $0xe8] sm:$0xf] %v790
  %855 = vst [vmem:[%s4 + $0xec] sm:$0xf] %v791
  %856 = vst [vmem:[%s4 + $0xf0] sm:$0xf] %v792
  %857 = vst [vmem:[%s4 + $0xf4] sm:$0xf] %v793
  %858 = vst [vmem:[%s4 + $0xf8] sm:$0xf] %v794
  %859 = vst [vmem:[%s4 + $0xfc] sm:$0xf] %v795
  // Predicated region
  $region18: #{up_conv_forward.3} parent=0 // pred_check
    _
  $region19: #{up_conv_forward.3} parent=0 // pred_check_branch
    %861 = sbr.rel (0) target = $region21
  $region20: #{up_conv_forward.3} parent=0 // pred_region
    _
  $region21: #{up_conv_forward.3} parent=0 // pred_fallthru
    _
  // Predicated region
  $region22: #{up_conv_forward.3} parent=0 // pred_check
    _
  $region23: #{up_conv_forward.3} parent=0 // pred_check_branch
    %863 = sbr.rel (0) target = $region25
  $region24: #{up_conv_forward.3} parent=0 // pred_region
    _
  $region25: #{up_conv_forward.3} parent=0 // pred_fallthru
    _

// kernel: up_conv_forward.2
$region0: #{up_conv_forward.2}
  #allocation0 [shape = 'u32[]', space=smem, size = 0x4, offset = 0x4, fixed_abs, tag = 'smem constant byte address 0x4 - core index']
  #allocation1 [shape = 'u32[72,128]{1,0:T(1,128)}', space=vmem, size = 0x9000, scoped, tag = 'internal scratch']
  %s0 = inlined_call_operand.vmem [shape: bf16[512,36], index: 0, kind: input, shape index: {}]
  %s1 = inlined_call_operand.vmem [shape: bf16[36,128], index: 1, kind: input, shape index: {}]
  %s2 = inlined_call_operand.vmem [shape: f32[1,128], index: 2, kind: output, shape index: {0}]
  %s3 = inlined_call_operand.vmem [shape: f32[1,128], index: 3, kind: output, shape index: {1}]
  %4 = xla_tuple %s2, %s3
  %s5 = sld [smem:[#allocation0]]
  $region30: #{up_conv_forward.2} parent=0
    _
  %s7 = ssub.s32 1, %s5
  %s8 = scalar_select 0, %s7, %s5
  // Predicated region
  $region2: #{up_conv_forward.2} parent=0 // pred_check
    _
  $region3: #{up_conv_forward.2} parent=0 // pred_check_branch
    %10 = sbr.rel (0) target = $region5
  $region4: #{up_conv_forward.2} parent=0 // pred_region
    _
  $region5: #{up_conv_forward.2} parent=0 // pred_fallthru
    _
  // Predicated region
  $region6: #{up_conv_forward.2} parent=0 // pred_check
    _
  $region7: #{up_conv_forward.2} parent=0 // pred_check_branch
    %12 = sbr.rel (0) target = $region9
  $region8: #{up_conv_forward.2} parent=0 // pred_region
    _
  $region9: #{up_conv_forward.2} parent=0 // pred_fallthru
    _
  %v14 = vld [vmem:[%s0] sm:$0xf]
  %v15 = vld [vmem:[%s0 + $0x4] sm:$0xf]
  %v16 = vld [vmem:[%s0 + $0x8] sm:$0xf]
  %v17 = vld [vmem:[%s0 + $0xc] sm:$0xf]
  %v18 = vld [vmem:[%s0 + $0x10] sm:$0xf]
  %v19 = vld [vmem:[%s0 + $0x14] sm:$0xf]
  %v20 = vld [vmem:[%s0 + $0x18] sm:$0xf]
  %v21 = vld [vmem:[%s0 + $0x1c] sm:$0xf]
  %v22 = vld [vmem:[%s0 + $0x20] sm:$0xf]
  %v23 = vld [vmem:[%s0 + $0x24] sm:$0xf]
  %v24 = vld [vmem:[%s0 + $0x28] sm:$0xf]
  %v25 = vld [vmem:[%s0 + $0x2c] sm:$0xf]
  %v26 = vld [vmem:[%s0 + $0x30] sm:$0xf]
  %v27 = vld [vmem:[%s0 + $0x34] sm:$0xf]
  %v28 = vld [vmem:[%s0 + $0x38] sm:$0xf]
  %v29 = vld [vmem:[%s0 + $0x3c] sm:$0xf]
  %v30 = vld [vmem:[%s0 + $0x40] sm:$0xf]
  %v31 = vld [vmem:[%s0 + $0x44] sm:$0xf]
  %v32 = vld [vmem:[%s0 + $0x48] sm:$0xf]
  %v33 = vld [vmem:[%s0 + $0x4c] sm:$0xf]
  %v34 = vld [vmem:[%s0 + $0x50] sm:$0xf]
  %v35 = vld [vmem:[%s0 + $0x54] sm:$0xf]
  %v36 = vld [vmem:[%s0 + $0x58] sm:$0xf]
  %v37 = vld [vmem:[%s0 + $0x5c] sm:$0xf]
  %v38 = vld [vmem:[%s0 + $0x60] sm:$0xf]
  %v39 = vld [vmem:[%s0 + $0x64] sm:$0xf]
  %v40 = vld [vmem:[%s0 + $0x68] sm:$0xf]
  %v41 = vld [vmem:[%s0 + $0x6c] sm:$0xf]
  %v42 = vld [vmem:[%s0 + $0x70] sm:$0xf]
  %v43 = vld [vmem:[%s0 + $0x74] sm:$0xf]
  %v44 = vld [vmem:[%s0 + $0x78] sm:$0xf]
  %v45 = vld [vmem:[%s0 + $0x7c] sm:$0xf]
  %v46 = vld [vmem:[%s0 + $0x80] sm:$0xf]
  %v47 = vld [vmem:[%s0 + $0x84] sm:$0xf]
  %v48 = vld [vmem:[%s0 + $0x88] sm:$0xf]
  %v49 = vld [vmem:[%s0 + $0x8c] sm:$0xf]
  %v50 = vld [vmem:[%s0 + $0x90] sm:$0xf]
  %v51 = vld [vmem:[%s0 + $0x94] sm:$0xf]
  %v52 = vld [vmem:[%s0 + $0x98] sm:$0xf]
  %v53 = vld [vmem:[%s0 + $0x9c] sm:$0xf]
  %v54 = vld [vmem:[%s0 + $0xa0] sm:$0xf]
  %v55 = vld [vmem:[%s0 + $0xa4] sm:$0xf]
  %v56 = vld [vmem:[%s0 + $0xa8] sm:$0xf]
  %v57 = vld [vmem:[%s0 + $0xac] sm:$0xf]
  %v58 = vld [vmem:[%s0 + $0xb0] sm:$0xf]
  %v59 = vld [vmem:[%s0 + $0xb4] sm:$0xf]
  %v60 = vld [vmem:[%s0 + $0xb8] sm:$0xf]
  %v61 = vld [vmem:[%s0 + $0xbc] sm:$0xf]
  %v62 = vld [vmem:[%s0 + $0xc0] sm:$0xf]
  %v63 = vld [vmem:[%s0 + $0xc4] sm:$0xf]
  %v64 = vld [vmem:[%s0 + $0xc8] sm:$0xf]
  %v65 = vld [vmem:[%s0 + $0xcc] sm:$0xf]
  %v66 = vld [vmem:[%s0 + $0xd0] sm:$0xf]
  %v67 = vld [vmem:[%s0 + $0xd4] sm:$0xf]
  %v68 = vld [vmem:[%s0 + $0xd8] sm:$0xf]
  %v69 = vld [vmem:[%s0 + $0xdc] sm:$0xf]
  %v70 = vld [vmem:[%s0 + $0xe0] sm:$0xf]
  %v71 = vld [vmem:[%s0 + $0xe4] sm:$0xf]
  %v72 = vld [vmem:[%s0 + $0xe8] sm:$0xf]
  %v73 = vld [vmem:[%s0 + $0xec] sm:$0xf]
  %v74 = vld [vmem:[%s0 + $0xf0] sm:$0xf]
  %v75 = vld [vmem:[%s0 + $0xf4] sm:$0xf]
  %v76 = vld [vmem:[%s0 + $0xf8] sm:$0xf]
  %v77 = vld [vmem:[%s0 + $0xfc] sm:$0xf]
  %v78 = vld [vmem:[%s1] sm:$0xf]
  %v79 = vld [vmem:[%s1 + $0x4] sm:$0xf]
  %v80 = vld [vmem:[%s1 + $0x8] sm:$0xf]
  %v81 = vld [vmem:[%s1 + $0xc] sm:$0xf]
  %v82 = vld [vmem:[%s1 + $0x10] sm:$0x3]
  %v147 = vunpack.c.l.b16 %v14
  %v148 = vunpack.c.l.b16 %v15
  %v149 = vunpack.c.l.b16 %v16
  %v150 = vunpack.c.l.b16 %v17
  %v151 = vunpack.c.l.b16 %v18
  %v152 = vunpack.c.l.b16 %v19
  %v153 = vunpack.c.l.b16 %v20
  %v154 = vunpack.c.l.b16 %v21
  %v155 = vunpack.c.l.b16 %v22
  %v156 = vunpack.c.l.b16 %v23
  %v157 = vunpack.c.l.b16 %v24
  %v158 = vunpack.c.l.b16 %v25
  %v159 = vunpack.c.l.b16 %v26
  %v160 = vunpack.c.l.b16 %v27
  %v161 = vunpack.c.l.b16 %v28
  %v162 = vunpack.c.l.b16 %v29
  %v163 = vunpack.c.l.b16 %v30
  %v164 = vunpack.c.l.b16 %v31
  %v165 = vunpack.c.l.b16 %v32
  %v166 = vunpack.c.l.b16 %v33
  %v167 = vunpack.c.l.b16 %v34
  %v168 = vunpack.c.l.b16 %v35
  %v169 = vunpack.c.l.b16 %v36
  %v170 = vunpack.c.l.b16 %v37
  %v171 = vunpack.c.l.b16 %v38
  %v172 = vunpack.c.l.b16 %v39
  %v173 = vunpack.c.l.b16 %v40
  %v174 = vunpack.c.l.b16 %v41
  %v175 = vunpack.c.l.b16 %v42
  %v176 = vunpack.c.l.b16 %v43
  %v177 = vunpack.c.l.b16 %v44
  %v178 = vunpack.c.l.b16 %v45
  %v179 = vunpack.c.l.b16 %v46
  %v180 = vunpack.c.l.b16 %v47
  %v181 = vunpack.c.l.b16 %v48
  %v182 = vunpack.c.l.b16 %v49
  %v183 = vunpack.c.l.b16 %v50
  %v184 = vunpack.c.l.b16 %v51
  %v185 = vunpack.c.l.b16 %v52
  %v186 = vunpack.c.l.b16 %v53
  %v187 = vunpack.c.l.b16 %v54
  %v188 = vunpack.c.l.b16 %v55
  %v189 = vunpack.c.l.b16 %v56
  %v190 = vunpack.c.l.b16 %v57
  %v191 = vunpack.c.l.b16 %v58
  %v192 = vunpack.c.l.b16 %v59
  %v193 = vunpack.c.l.b16 %v60
  %v194 = vunpack.c.l.b16 %v61
  %v195 = vunpack.c.l.b16 %v62
  %v196 = vunpack.c.l.b16 %v63
  %v197 = vunpack.c.l.b16 %v64
  %v198 = vunpack.c.l.b16 %v65
  %v199 = vunpack.c.l.b16 %v66
  %v200 = vunpack.c.l.b16 %v67
  %v201 = vunpack.c.l.b16 %v68
  %v202 = vunpack.c.l.b16 %v69
  %v203 = vunpack.c.l.b16 %v70
  %v204 = vunpack.c.l.b16 %v71
  %v205 = vunpack.c.l.b16 %v72
  %v206 = vunpack.c.l.b16 %v73
  %v207 = vunpack.c.l.b16 %v74
  %v208 = vunpack.c.l.b16 %v75
  %v209 = vunpack.c.l.b16 %v76
  %v210 = vunpack.c.l.b16 %v77
  %v211 = vpack.c.b16 %v148, %v147
  %v212 = vpack.c.b16 %v150, %v149
  %v213 = vpack.c.b16 %v152, %v151
  %v214 = vpack.c.b16 %v154, %v153
  %v215 = vpack.c.b16 %v156, %v155
  %v216 = vpack.c.b16 %v158, %v157
  %v217 = vpack.c.b16 %v160, %v159
  %v218 = vpack.c.b16 %v162, %v161
  %v219 = vpack.c.b16 %v164, %v163
  %v220 = vpack.c.b16 %v166, %v165
  %v221 = vpack.c.b16 %v168, %v167
  %v222 = vpack.c.b16 %v170, %v169
  %v223 = vpack.c.b16 %v172, %v171
  %v224 = vpack.c.b16 %v174, %v173
  %v225 = vpack.c.b16 %v176, %v175
  %v226 = vpack.c.b16 %v178, %v177
  %v227 = vpack.c.b16 %v180, %v179
  %v228 = vpack.c.b16 %v182, %v181
  %v229 = vpack.c.b16 %v184, %v183
  %v230 = vpack.c.b16 %v186, %v185
  %v231 = vpack.c.b16 %v188, %v187
  %v232 = vpack.c.b16 %v190, %v189
  %v233 = vpack.c.b16 %v192, %v191
  %v234 = vpack.c.b16 %v194, %v193
  %v235 = vpack.c.b16 %v196, %v195
  %v236 = vpack.c.b16 %v198, %v197
  %v237 = vpack.c.b16 %v200, %v199
  %v238 = vpack.c.b16 %v202, %v201
  %v239 = vpack.c.b16 %v204, %v203
  %v240 = vpack.c.b16 %v206, %v205
  %v241 = vpack.c.b16 %v208, %v207
  %v242 = vpack.c.b16 %v210, %v209
  %v248 = vunpack.c.l.b16 %v78
  %v249 = vunpack.c.l.b16 %v79
  %v250 = vunpack.c.l.b16 %v80
  %v251 = vunpack.c.l.b16 %v81
  %v252 = vunpack.c.l.b16 %v82
  %v253 = vpack.c.b16 %v249, %v248
  %v254 = vpack.c.b16 %v251, %v250
  %v255 = vpack.c.b16 %v252, %v252
  %vm258 = vcmask 293888
  %v260 = vsel %vm258, %v211, 0
  %v263 = vsel %vm258, %v212, 0
  %v266 = vsel %vm258, %v213, 0
  %v269 = vsel %vm258, %v214, 0
  %v272 = vsel %vm258, %v215, 0
  %v275 = vsel %vm258, %v216, 0
  %v278 = vsel %vm258, %v217, 0
  %v281 = vsel %vm258, %v218, 0
  %v284 = vsel %vm258, %v219, 0
  %v287 = vsel %vm258, %v220, 0
  %v290 = vsel %vm258, %v221, 0
  %v293 = vsel %vm258, %v222, 0
  %v296 = vsel %vm258, %v223, 0
  %v299 = vsel %vm258, %v224, 0
  %v302 = vsel %vm258, %v225, 0
  %v305 = vsel %vm258, %v226, 0
  %v308 = vsel %vm258, %v227, 0
  %v311 = vsel %vm258, %v228, 0
  %v314 = vsel %vm258, %v229, 0
  %v317 = vsel %vm258, %v230, 0
  %v320 = vsel %vm258, %v231, 0
  %v323 = vsel %vm258, %v232, 0
  %v326 = vsel %vm258, %v233, 0
  %v329 = vsel %vm258, %v234, 0
  %v332 = vsel %vm258, %v235, 0
  %v335 = vsel %vm258, %v236, 0
  %v338 = vsel %vm258, %v237, 0
  %v341 = vsel %vm258, %v238, 0
  %v344 = vsel %vm258, %v239, 0
  %v347 = vsel %vm258, %v240, 0
  %v350 = vsel %vm258, %v241, 0
  %v353 = vsel %vm258, %v242, 0
  %vm355 = vcmask 1041408
  %v357 = vsel %vm355, %v255, 0
  %359 = vmatpush.bf16.msra.mxu0 0
  %360 = vmatpush.bf16.msra.mxu0 0
  %361 = vmatpush.bf16.msra.mxu0 0
  %362 = vmatpush.bf16.msra.mxu0 0
  %363 = vmatpush.bf16.msra.mxu0 0
  %364 = vmatpush.bf16.msra.mxu0 %v357
  %365 = vmatpush.bf16.msra.mxu0 %v254
  %366 = vmatpush.bf16.msra.mxu0 %v253
  %367 = vmatmul.bf16.gmra.mxu0 %v260
  %v368 = vpop.f32.mrf.mxu0
  %v369 = vadd.f32 0.0, %v368
  %v370 = vpop.f32.mrf.mxu0
  %v371 = vadd.f32 0.0, %v370
  %372 = vmatmul.bf16.gmra.mxu0 %v263
  %v373 = vpop.f32.mrf.mxu0
  %v374 = vadd.f32 0.0, %v373
  %v375 = vpop.f32.mrf.mxu0
  %v376 = vadd.f32 0.0, %v375
  %377 = vmatmul.bf16.gmra.mxu0 %v266
  %v378 = vpop.f32.mrf.mxu0
  %v379 = vadd.f32 0.0, %v378
  %v380 = vpop.f32.mrf.mxu0
  %v381 = vadd.f32 0.0, %v380
  %382 = vmatmul.bf16.gmra.mxu0 %v269
  %v383 = vpop.f32.mrf.mxu0
  %v384 = vadd.f32 0.0, %v383
  %v385 = vpop.f32.mrf.mxu0
  %v386 = vadd.f32 0.0, %v385
  %387 = vmatmul.bf16.gmra.mxu0 %v272
  %v388 = vpop.f32.mrf.mxu0
  %v389 = vadd.f32 0.0, %v388
  %v390 = vpop.f32.mrf.mxu0
  %v391 = vadd.f32 0.0, %v390
  %392 = vmatmul.bf16.gmra.mxu0 %v275
  %v393 = vpop.f32.mrf.mxu0
  %v394 = vadd.f32 0.0, %v393
  %v395 = vpop.f32.mrf.mxu0
  %v396 = vadd.f32 0.0, %v395
  %397 = vmatmul.bf16.gmra.mxu0 %v278
  %v398 = vpop.f32.mrf.mxu0
  %v399 = vadd.f32 0.0, %v398
  %v400 = vpop.f32.mrf.mxu0
  %v401 = vadd.f32 0.0, %v400
  %402 = vmatmul.bf16.gmra.mxu0 %v281
  %v403 = vpop.f32.mrf.mxu0
  %v404 = vadd.f32 0.0, %v403
  %v405 = vpop.f32.mrf.mxu0
  %v406 = vadd.f32 0.0, %v405
  %407 = vmatmul.bf16.gmra.mxu0 %v284
  %v408 = vpop.f32.mrf.mxu0
  %v409 = vadd.f32 0.0, %v408
  %v410 = vpop.f32.mrf.mxu0
  %v411 = vadd.f32 0.0, %v410
  %412 = vmatmul.bf16.gmra.mxu0 %v287
  %v413 = vpop.f32.mrf.mxu0
  %v414 = vadd.f32 0.0, %v413
  %v415 = vpop.f32.mrf.mxu0
  %v416 = vadd.f32 0.0, %v415
  %417 = vmatmul.bf16.gmra.mxu0 %v290
  %v418 = vpop.f32.mrf.mxu0
  %v419 = vadd.f32 0.0, %v418
  %v420 = vpop.f32.mrf.mxu0
  %v421 = vadd.f32 0.0, %v420
  %422 = vmatmul.bf16.gmra.mxu0 %v293
  %v423 = vpop.f32.mrf.mxu0
  %v424 = vadd.f32 0.0, %v423
  %v425 = vpop.f32.mrf.mxu0
  %v426 = vadd.f32 0.0, %v425
  %427 = vmatmul.bf16.gmra.mxu0 %v296
  %v428 = vpop.f32.mrf.mxu0
  %v429 = vadd.f32 0.0, %v428
  %v430 = vpop.f32.mrf.mxu0
  %v431 = vadd.f32 0.0, %v430
  %432 = vmatmul.bf16.gmra.mxu0 %v299
  %v433 = vpop.f32.mrf.mxu0
  %v434 = vadd.f32 0.0, %v433
  %v435 = vpop.f32.mrf.mxu0
  %v436 = vadd.f32 0.0, %v435
  %437 = vmatmul.bf16.gmra.mxu0 %v302
  %v438 = vpop.f32.mrf.mxu0
  %v439 = vadd.f32 0.0, %v438
  %v440 = vpop.f32.mrf.mxu0
  %v441 = vadd.f32 0.0, %v440
  %442 = vmatmul.bf16.gmra.mxu0 %v305
  %v443 = vpop.f32.mrf.mxu0
  %v444 = vadd.f32 0.0, %v443
  %v445 = vpop.f32.mrf.mxu0
  %v446 = vadd.f32 0.0, %v445
  %447 = vmatmul.bf16.gmra.mxu0 %v308
  %v448 = vpop.f32.mrf.mxu0
  %v449 = vadd.f32 0.0, %v448
  %v450 = vpop.f32.mrf.mxu0
  %v451 = vadd.f32 0.0, %v450
  %452 = vmatmul.bf16.gmra.mxu0 %v311
  %v453 = vpop.f32.mrf.mxu0
  %v454 = vadd.f32 0.0, %v453
  %v455 = vpop.f32.mrf.mxu0
  %v456 = vadd.f32 0.0, %v455
  %457 = vmatmul.bf16.gmra.mxu0 %v314
  %v458 = vpop.f32.mrf.mxu0
  %v459 = vadd.f32 0.0, %v458
  %v460 = vpop.f32.mrf.mxu0
  %v461 = vadd.f32 0.0, %v460
  %462 = vmatmul.bf16.gmra.mxu0 %v317
  %v463 = vpop.f32.mrf.mxu0
  %v464 = vadd.f32 0.0, %v463
  %v465 = vpop.f32.mrf.mxu0
  %v466 = vadd.f32 0.0, %v465
  %467 = vmatmul.bf16.gmra.mxu0 %v320
  %v468 = vpop.f32.mrf.mxu0
  %v469 = vadd.f32 0.0, %v468
  %v470 = vpop.f32.mrf.mxu0
  %v471 = vadd.f32 0.0, %v470
  %472 = vmatmul.bf16.gmra.mxu0 %v323
  %v473 = vpop.f32.mrf.mxu0
  %v474 = vadd.f32 0.0, %v473
  %v475 = vpop.f32.mrf.mxu0
  %v476 = vadd.f32 0.0, %v475
  %477 = vmatmul.bf16.gmra.mxu0 %v326
  %v478 = vpop.f32.mrf.mxu0
  %v479 = vadd.f32 0.0, %v478
  %v480 = vpop.f32.mrf.mxu0
  %v481 = vadd.f32 0.0, %v480
  %482 = vmatmul.bf16.gmra.mxu0 %v329
  %v483 = vpop.f32.mrf.mxu0
  %v484 = vadd.f32 0.0, %v483
  %v485 = vpop.f32.mrf.mxu0
  %v486 = vadd.f32 0.0, %v485
  %487 = vmatmul.bf16.gmra.mxu0 %v332
  %v488 = vpop.f32.mrf.mxu0
  %v489 = vadd.f32 0.0, %v488
  %v490 = vpop.f32.mrf.mxu0
  %v491 = vadd.f32 0.0, %v490
  %492 = vmatmul.bf16.gmra.mxu0 %v335
  %v493 = vpop.f32.mrf.mxu0
  %v494 = vadd.f32 0.0, %v493
  %v495 = vpop.f32.mrf.mxu0
  %v496 = vadd.f32 0.0, %v495
  %497 = vmatmul.bf16.gmra.mxu0 %v338
  %v498 = vpop.f32.mrf.mxu0
  %v499 = vadd.f32 0.0, %v498
  %v500 = vpop.f32.mrf.mxu0
  %v501 = vadd.f32 0.0, %v500
  %502 = vmatmul.bf16.gmra.mxu0 %v341
  %v503 = vpop.f32.mrf.mxu0
  %v504 = vadd.f32 0.0, %v503
  %v505 = vpop.f32.mrf.mxu0
  %v506 = vadd.f32 0.0, %v505
  %507 = vmatmul.bf16.gmra.mxu0 %v344
  %v508 = vpop.f32.mrf.mxu0
  %v509 = vadd.f32 0.0, %v508
  %v510 = vpop.f32.mrf.mxu0
  %v511 = vadd.f32 0.0, %v510
  %512 = vmatmul.bf16.gmra.mxu0 %v347
  %v513 = vpop.f32.mrf.mxu0
  %v514 = vadd.f32 0.0, %v513
  %v515 = vpop.f32.mrf.mxu0
  %v516 = vadd.f32 0.0, %v515
  %517 = vmatmul.bf16.gmra.mxu0 %v350
  %v518 = vpop.f32.mrf.mxu0
  %v519 = vadd.f32 0.0, %v518
  %v520 = vpop.f32.mrf.mxu0
  %v521 = vadd.f32 0.0, %v520
  %522 = vmatmul.bf16.gmra.mxu0 %v353
  %v523 = vpop.f32.mrf.mxu0
  %v524 = vadd.f32 0.0, %v523
  %v525 = vpop.f32.mrf.mxu0
  %v526 = vadd.f32 0.0, %v525
  %527 = vdwg.mxu0
  %p528 = scmp.eq.s32.totalorder 0, 0
  // Predicated region
  $region10: #{up_conv_forward.2} parent=0 // pred_check
    %p529 = pneg %p528
  $region11: #{up_conv_forward.2} parent=0 // pred_check_branch
    %531 = sbr.rel (%p529) target = $region13
  $region12: #{up_conv_forward.2} parent=0 // pred_region
    %532 = vst [vmem:[%s2] sm:$0x1] 0.0
    %533 = vst [vmem:[%s3] sm:$0x1] 0.0
  $region13: #{up_conv_forward.2} parent=0 // pred_fallthru
    _
  %v534 = vld [vmem:[%s2] sm:$0x1]
  %v535 = vadd.f32 %v369, %v371
  %v536 = vadd.f32 %v535, %v374
  %v537 = vadd.f32 %v536, %v376
  %v538 = vadd.f32 %v537, %v379
  %v539 = vadd.f32 %v538, %v381
  %v540 = vadd.f32 %v539, %v384
  %v541 = vadd.f32 %v540, %v386
  %v542 = vadd.f32 %v541, %v389
  %v543 = vadd.f32 %v542, %v391
  %v544 = vadd.f32 %v543, %v394
  %v545 = vadd.f32 %v544, %v396
  %v546 = vadd.f32 %v545, %v399
  %v547 = vadd.f32 %v546, %v401
  %v548 = vadd.f32 %v547, %v404
  %v549 = vadd.f32 %v548, %v406
  %v550 = vadd.f32 %v549, %v409
  %v551 = vadd.f32 %v550, %v411
  %v552 = vadd.f32 %v551, %v414
  %v553 = vadd.f32 %v552, %v416
  %v554 = vadd.f32 %v553, %v419
  %v555 = vadd.f32 %v554, %v421
  %v556 = vadd.f32 %v555, %v424
  %v557 = vadd.f32 %v556, %v426
  %v558 = vadd.f32 %v557, %v429
  %v559 = vadd.f32 %v558, %v431
  %v560 = vadd.f32 %v559, %v434
  %v561 = vadd.f32 %v560, %v436
  %v562 = vadd.f32 %v561, %v439
  %v563 = vadd.f32 %v562, %v441
  %v564 = vadd.f32 %v563, %v444
  %v565 = vadd.f32 %v564, %v446
  %v566 = vadd.f32 %v565, %v449
  %v567 = vadd.f32 %v566, %v451
  %v568 = vadd.f32 %v567, %v454
  %v569 = vadd.f32 %v568, %v456
  %v570 = vadd.f32 %v569, %v459
  %v571 = vadd.f32 %v570, %v461
  %v572 = vadd.f32 %v571, %v464
  %v573 = vadd.f32 %v572, %v466
  %v574 = vadd.f32 %v573, %v469
  %v575 = vadd.f32 %v574, %v471
  %v576 = vadd.f32 %v575, %v474
  %v577 = vadd.f32 %v576, %v476
  %v578 = vadd.f32 %v577, %v479
  %v579 = vadd.f32 %v578, %v481
  %v580 = vadd.f32 %v579, %v484
  %v581 = vadd.f32 %v580, %v486
  %v582 = vadd.f32 %v581, %v489
  %v583 = vadd.f32 %v582, %v491
  %v584 = vadd.f32 %v583, %v494
  %v585 = vadd.f32 %v584, %v496
  %v586 = vadd.f32 %v585, %v499
  %v587 = vadd.f32 %v586, %v501
  %v588 = vadd.f32 %v587, %v504
  %v589 = vadd.f32 %v588, %v506
  %v590 = vadd.f32 %v589, %v509
  %v591 = vadd.f32 %v590, %v511
  %v592 = vadd.f32 %v591, %v514
  %v593 = vadd.f32 %v592, %v516
  %v594 = vadd.f32 %v593, %v519
  %v595 = vadd.f32 %v594, %v521
  %v596 = vadd.f32 %v595, %v524
  %v597 = vadd.f32 %v596, %v526
  %v598 = vrot.slane %v597, 4
  %v599 = vadd.f32 %v597, %v598
  %v600 = vrot.slane %v599, 2
  %v601 = vadd.f32 %v599, %v600
  %v602 = vrot.slane %v601, 1
  %v603 = vadd.f32 %v601, %v602
  %v604 = vadd.f32 %v534, %v603
  %605 = vst [vmem:[%s2] sm:$0x1] %v604
  %v606 = vld [vmem:[%s3] sm:$0x1]
  %v607 = vmul.f32 %v369, %v369
  %v608 = vmul.f32 %v371, %v371
  %v609 = vmul.f32 %v374, %v374
  %v610 = vmul.f32 %v376, %v376
  %v611 = vmul.f32 %v379, %v379
  %v612 = vmul.f32 %v381, %v381
  %v613 = vmul.f32 %v384, %v384
  %v614 = vmul.f32 %v386, %v386
  %v615 = vmul.f32 %v389, %v389
  %v616 = vmul.f32 %v391, %v391
  %v617 = vmul.f32 %v394, %v394
  %v618 = vmul.f32 %v396, %v396
  %v619 = vmul.f32 %v399, %v399
  %v620 = vmul.f32 %v401, %v401
  %v621 = vmul.f32 %v404, %v404
  %v622 = vmul.f32 %v406, %v406
  %v623 = vmul.f32 %v409, %v409
  %v624 = vmul.f32 %v411, %v411
  %v625 = vmul.f32 %v414, %v414
  %v626 = vmul.f32 %v416, %v416
  %v627 = vmul.f32 %v419, %v419
  %v628 = vmul.f32 %v421, %v421
  %v629 = vmul.f32 %v424, %v424
  %v630 = vmul.f32 %v426, %v426
  %v631 = vmul.f32 %v429, %v429
  %v632 = vmul.f32 %v431, %v431
  %v633 = vmul.f32 %v434, %v434
  %v634 = vmul.f32 %v436, %v436
  %v635 = vmul.f32 %v439, %v439
  %v636 = vmul.f32 %v441, %v441
  %v637 = vmul.f32 %v444, %v444
  %v638 = vmul.f32 %v446, %v446
  %v639 = vmul.f32 %v449, %v449
  %v640 = vmul.f32 %v451, %v451
  %v641 = vmul.f32 %v454, %v454
  %v642 = vmul.f32 %v456, %v456
  %v643 = vmul.f32 %v459, %v459
  %v644 = vmul.f32 %v461, %v461
  %v645 = vmul.f32 %v464, %v464
  %v646 = vmul.f32 %v466, %v466
  %v647 = vmul.f32 %v469, %v469
  %v648 = vmul.f32 %v471, %v471
  %v649 = vmul.f32 %v474, %v474
  %v650 = vmul.f32 %v476, %v476
  %v651 = vmul.f32 %v479, %v479
  %v652 = vmul.f32 %v481, %v481
  %v653 = vmul.f32 %v484, %v484
  %v654 = vmul.f32 %v486, %v486
  %v655 = vmul.f32 %v489, %v489
  %v656 = vmul.f32 %v491, %v491
  %v657 = vmul.f32 %v494, %v494
  %v658 = vmul.f32 %v496, %v496
  %v659 = vmul.f32 %v499, %v499
  %v660 = vmul.f32 %v501, %v501
  %v661 = vmul.f32 %v504, %v504
  %v662 = vmul.f32 %v506, %v506
  %v663 = vmul.f32 %v509, %v509
  %v664 = vmul.f32 %v511, %v511
  %v665 = vmul.f32 %v514, %v514
  %v666 = vmul.f32 %v516, %v516
  %v667 = vmul.f32 %v519, %v519
  %v668 = vmul.f32 %v521, %v521
  %v669 = vmul.f32 %v524, %v524
  %v670 = vmul.f32 %v526, %v526
  %v671 = vadd.f32 %v607, %v608
  %v672 = vadd.f32 %v671, %v609
  %v673 = vadd.f32 %v672, %v610
  %v674 = vadd.f32 %v673, %v611
  %v675 = vadd.f32 %v674, %v612
  %v676 = vadd.f32 %v675, %v613
  %v677 = vadd.f32 %v676, %v614
  %v678 = vadd.f32 %v677, %v615
  %v679 = vadd.f32 %v678, %v616
  %v680 = vadd.f32 %v679, %v617
  %v681 = vadd.f32 %v680, %v618
  %v682 = vadd.f32 %v681, %v619
  %v683 = vadd.f32 %v682, %v620
  %v684 = vadd.f32 %v683, %v621
  %v685 = vadd.f32 %v684, %v622
  %v686 = vadd.f32 %v685, %v623
  %v687 = vadd.f32 %v686, %v624
  %v688 = vadd.f32 %v687, %v625
  %v689 = vadd.f32 %v688, %v626
  %v690 = vadd.f32 %v689, %v627
  %v691 = vadd.f32 %v690, %v628
  %v692 = vadd.f32 %v691, %v629
  %v693 = vadd.f32 %v692, %v630
  %v694 = vadd.f32 %v693, %v631
  %v695 = vadd.f32 %v694, %v632
  %v696 = vadd.f32 %v695, %v633
  %v697 = vadd.f32 %v696, %v634
  %v698 = vadd.f32 %v697, %v635
  %v699 = vadd.f32 %v698, %v636
  %v700 = vadd.f32 %v699, %v637
  %v701 = vadd.f32 %v700, %v638
  %v702 = vadd.f32 %v701, %v639
  %v703 = vadd.f32 %v702, %v640
  %v704 = vadd.f32 %v703, %v641
  %v705 = vadd.f32 %v704, %v642
  %v706 = vadd.f32 %v705, %v643
  %v707 = vadd.f32 %v706, %v644
  %v708 = vadd.f32 %v707, %v645
  %v709 = vadd.f32 %v708, %v646
  %v710 = vadd.f32 %v709, %v647
  %v711 = vadd.f32 %v710, %v648
  %v712 = vadd.f32 %v711, %v649
  %v713 = vadd.f32 %v712, %v650
  %v714 = vadd.f32 %v713, %v651
  %v715 = vadd.f32 %v714, %v652
  %v716 = vadd.f32 %v715, %v653
  %v717 = vadd.f32 %v716, %v654
  %v718 = vadd.f32 %v717, %v655
  %v719 = vadd.f32 %v718, %v656
  %v720 = vadd.f32 %v719, %v657
  %v721 = vadd.f32 %v720, %v658
  %v722 = vadd.f32 %v721, %v659
  %v723 = vadd.f32 %v722, %v660
  %v724 = vadd.f32 %v723, %v661
  %v725 = vadd.f32 %v724, %v662
  %v726 = vadd.f32 %v725, %v663
  %v727 = vadd.f32 %v726, %v664
  %v728 = vadd.f32 %v727, %v665
  %v729 = vadd.f32 %v728, %v666
  %v730 = vadd.f32 %v729, %v667
  %v731 = vadd.f32 %v730, %v668
  %v732 = vadd.f32 %v731, %v669
  %v733 = vadd.f32 %v732, %v670
  %v734 = vrot.slane %v733, 4
  %v735 = vadd.f32 %v733, %v734
  %v736 = vrot.slane %v735, 2
  %v737 = vadd.f32 %v735, %v736
  %v738 = vrot.slane %v737, 1
  %v739 = vadd.f32 %v737, %v738
  %v740 = vadd.f32 %v606, %v739
  %741 = vst [vmem:[%s3] sm:$0x1] %v740
  // Predicated region
  $region14: #{up_conv_forward.2} parent=0 // pred_check
    _
  $region15: #{up_conv_forward.2} parent=0 // pred_check_branch
    %743 = sbr.rel (0) target = $region17
  $region16: #{up_conv_forward.2} parent=0 // pred_region
    _
  $region17: #{up_conv_forward.2} parent=0 // pred_fallthru
    _
  // Predicated region
  $region18: #{up_conv_forward.2} parent=0 // pred_check
    _
  $region19: #{up_conv_forward.2} parent=0 // pred_check_branch
    %745 = sbr.rel (0) target = $region21
  $region20: #{up_conv_forward.2} parent=0 // pred_region
    _
  $region21: #{up_conv_forward.2} parent=0 // pred_fallthru
    _
  // Predicated region
  $region22: #{up_conv_forward.2} parent=0 // pred_check
    _
  $region23: #{up_conv_forward.2} parent=0 // pred_check_branch
    %747 = sbr.rel (0) target = $region25
  $region24: #{up_conv_forward.2} parent=0 // pred_region
    _
  $region25: #{up_conv_forward.2} parent=0 // pred_fallthru
    _
  // Predicated region
  $region26: #{up_conv_forward.2} parent=0 // pred_check
    _
  $region27: #{up_conv_forward.2} parent=0 // pred_check_branch
    %749 = sbr.rel (0) target = $region29
  $region28: #{up_conv_forward.2} parent=0 // pred_region
    _
  $region29: #{up_conv_forward.2} parent=0 // pred_fallthru
    _

</llo_original>
